<compile_context>
chip_gen: v5e
topology: v5e:2x2
jax: 0.10.0
libtpu: 0.0.40
codegen_flags: <defaults>
</compile_context>

<pallas_src>
import functools

import jax
import jax.numpy as jnp
from jax.experimental import pallas as pl
from jax.experimental.pallas import tpu as pltpu


def _round_up(x, m):
    return (x + m - 1) // m * m


def _pick_ff_chunk(ff):
    for c in (512, 384, 256, 128):
        if ff % c == 0:
            return c
    return ff


# ---------------------------------------------------------------------------
# Kernel 1: fused LayerNorm(norm2) + QKV projection
# ---------------------------------------------------------------------------

def _ln_qkv_kernel(x_ref, g_ref, b_ref, wqkv_ref, bqkv_ref, h_ref, qkv_ref, *, eps):
    x = x_ref[...].astype(jnp.float32)                       # (tm, D)
    mu = jnp.mean(x, axis=-1, keepdims=True)
    xc = x - mu
    var = jnp.mean(xc * xc, axis=-1, keepdims=True)
    hnorm = xc * jax.lax.rsqrt(var + eps) * g_ref[...] + b_ref[...]
    h_ref[...] = hnorm.astype(h_ref.dtype)                   # bf16 residual copy
    qkv = jnp.dot(hnorm.astype(wqkv_ref.dtype), wqkv_ref[...],
                  preferred_element_type=jnp.float32) + bqkv_ref[...]
    qkv_ref[...] = qkv.astype(qkv_ref.dtype)                 # bf16


# ---------------------------------------------------------------------------
# Kernel 2: all-heads attention for one batch element (lane-dense output)
# ---------------------------------------------------------------------------

def _attn_kernel(qkv_ref, o_ref, *, nhead, scale):
    S, three_d = qkv_ref.shape
    D = three_d // 3
    hd = D // nhead
    x = qkv_ref[...]                                         # (S, 3D) bf16
    for h in range(nhead):                                   # small static unroll
        sl = slice(h * hd, (h + 1) * hd)
        q = x[:, sl]
        k = x[:, D + h * hd:D + (h + 1) * hd]
        v = x[:, 2 * D + h * hd:2 * D + (h + 1) * hd]
        s = jax.lax.dot_general(q, k, (((1,), (1,)), ((), ())),
                                preferred_element_type=jnp.float32) * scale
        m = jnp.max(s, axis=-1, keepdims=True)
        e = jnp.exp(s - m)
        denom = jnp.sum(e, axis=-1, keepdims=True)
        p = e * pl.reciprocal(denom, approx=True)            # divide -> EUP slot
        # store this head immediately so its (S,S) scores die before the next
        o_ref[:, sl] = jnp.dot(p.astype(v.dtype), v,
                               preferred_element_type=jnp.float32).astype(o_ref.dtype)


# ---------------------------------------------------------------------------
# Kernel 3: out-proj + residual + LayerNorm(norm1) + FF1 + ReLU + FF2 + residual
# ---------------------------------------------------------------------------

def _out_ln_ffn_kernel(ctx_ref, h_ref, wout_ref, bout_ref, g_ref, b_ref,
                       wff1_ref, bff1_ref, wff2_ref, bff2_ref, o_ref,
                       *, eps, ff_chunk, n_ff_chunks):
    r1 = (jnp.dot(ctx_ref[...], wout_ref[...], preferred_element_type=jnp.float32)
          + bout_ref[...] + h_ref[...].astype(jnp.float32))            # (tm, D)
    mu = jnp.mean(r1, axis=-1, keepdims=True)
    xc = r1 - mu
    var = jnp.mean(xc * xc, axis=-1, keepdims=True)
    h2 = xc * jax.lax.rsqrt(var + eps) * g_ref[...] + b_ref[...]       # f32
    h2_lo = h2.astype(wff1_ref.dtype)                                  # bf16

    def ff_body(c, acc):
        start = pl.multiple_of(c * ff_chunk, ff_chunk)
        f = jnp.maximum(
            jnp.dot(h2_lo, wff1_ref[:, pl.ds(start, ff_chunk)],
                    preferred_element_type=jnp.float32)
            + bff1_ref[:, pl.ds(start, ff_chunk)], 0.0)                # (tm, ff_chunk)
        return acc + jnp.dot(f.astype(wff2_ref.dtype),
                             wff2_ref[pl.ds(start, ff_chunk), :],
                             preferred_element_type=jnp.float32)

    acc0 = h2 + bff2_ref[...]                                          # residual + b2
    r2 = jax.lax.fori_loop(0, n_ff_chunks, ff_body, acc0, unroll=True)
    o_ref[...] = r2.astype(o_ref.dtype)


# ---------------------------------------------------------------------------
# TransformerEncoderLayer forward
# ---------------------------------------------------------------------------

def transformer_encoder_layer(src, p, nhead, eps=1e-5, single_buffer_weights=True):
    S, B, D = src.shape
    assert D % nhead == 0
    assert D % 128 == 0, "model dim must be a multiple of the 128-wide lane axis"
    FF = p["w_ff1"].shape[1]
    hd = D // nhead
    n = S * B

    # >= 2 grid steps (v7x has 2 TensorCores), up to 512 rows per step (v6e).
    tm = min(512, max(8, _round_up(pl.cdiv(n, 2), 8)))
    grid_rows = pl.cdiv(n, tm)

    cparams = pltpu.CompilerParams(dimension_semantics=("parallel",),
                                   vmem_limit_bytes=64 * 1024 * 1024)

    # bf16 weights: native MXU dtype, half the resident VMEM.
    bf16 = jnp.bfloat16
    w_qkv = p["w_qkv"].astype(bf16)
    w_out = p["w_out"].astype(bf16)
    w_ff1 = p["w_ff1"].astype(bf16)
    w_ff2 = p["w_ff2"].astype(bf16)

    if single_buffer_weights:
        def resident(shape):   # constant index -> single buffer is enough
            return pl.BlockSpec(shape, lambda i: (0, 0),
                                pipeline_mode=pl.Buffered(1))
    else:
        def resident(shape):
            return pl.BlockSpec(shape, lambda i: (0, 0))

    row_D = pl.BlockSpec((tm, D), lambda i: (i, 0))
    row_3D = pl.BlockSpec((tm, 3 * D), lambda i: (i, 0))

    x2 = src.reshape(n, D)

    # ---- Kernel 1: LN2 + QKV ------------------------------------------------
    ce1 = pl.CostEstimate(
        flops=2 * n * D * 3 * D,
        transcendentals=n,
        bytes_accessed=n * D * 4 + D * 3 * D * 2 + 5 * D * 4
        + n * D * 2 + n * 3 * D * 2)
    h, qkv = pl.pallas_call(
        functools.partial(_ln_qkv_kernel, eps=eps),
        out_shape=(jax.ShapeDtypeStruct((n, D), bf16),
                   jax.ShapeDtypeStruct((n, 3 * D), bf16)),
        grid=(grid_rows,),
        in_specs=[row_D, resident((1, D)), resident((1, D)),
                  resident((D, 3 * D)), resident((1, 3 * D))],
        out_specs=[row_D, row_3D],
        compiler_params=cparams,
        cost_estimate=ce1,
    )(x2, p["ln2_g"], p["ln2_b"], w_qkv, p["b_qkv"])

    # ---- Kernel 2: attention (grid over batch, lane-dense ctx) ---------------
    qkv_b = qkv.reshape(S, B * 3 * D)       # free reshape: rows are seq-major
    ce2 = pl.CostEstimate(
        flops=4 * B * S * S * D,
        transcendentals=B * nhead * S * S,
        bytes_accessed=n * 3 * D * 2 + n * D * 2)
    ctx = pl.pallas_call(
        functools.partial(_attn_kernel, nhead=nhead, scale=1.0 / float(hd) ** 0.5),
        out_shape=jax.ShapeDtypeStruct((S, B * D), bf16),
        grid=(B,),
        in_specs=[pl.BlockSpec((S, 3 * D), lambda b: (0, b))],
        out_specs=pl.BlockSpec((S, D), lambda b: (0, b)),
        compiler_params=pltpu.CompilerParams(dimension_semantics=("parallel",),
                                             vmem_limit_bytes=64 * 1024 * 1024),
        cost_estimate=ce2,
    )(qkv_b)
    ctx = ctx.reshape(n, D)                 # free reshape back to token rows

    # ---- Kernel 3: out-proj + residual + LN1 + MLP + residual ----------------
    ff_chunk = _pick_ff_chunk(FF)
    n_ff_chunks = FF // ff_chunk
    ce3 = pl.CostEstimate(
        flops=2 * n * D * D + 4 * n * D * FF,
        transcendentals=n,
        bytes_accessed=2 * n * D * 2 + n * D * 4
        + (D * D + 2 * D * FF) * 2 + (5 * D + FF) * 4)
    out = pl.pallas_call(
        functools.partial(_out_ln_ffn_kernel, eps=eps,
                          ff_chunk=ff_chunk, n_ff_chunks=n_ff_chunks),
        out_shape=jax.ShapeDtypeStruct((n, D), src.dtype),
        grid=(grid_rows,),
        in_specs=[row_D, row_D,
                  resident((D, D)), resident((1, D)),
                  resident((1, D)), resident((1, D)),
                  resident((D, FF)), resident((1, FF)),
                  resident((FF, D)), resident((1, D))],
        out_specs=row_D,
        compiler_params=cparams,
        cost_estimate=ce3,
    )(ctx, h, w_out, p["b_out"], p["ln1_g"], p["ln1_b"],
      w_ff1, p["b_ff1"], w_ff2, p["b_ff2"])

    return out.reshape(S, B, D)


# ---------------------------------------------------------------------------
# Pure-JAX f32 reference (same math / same [Q | K | V] head-major weight layout)
# ---------------------------------------------------------------------------

def reference(src, p, nhead, eps=1e-5):
    S, B, D = src.shape
    hd = D // nhead

    def ln(z, g, b):
        mu = jnp.mean(z, -1, keepdims=True)
        var = jnp.mean((z - mu) ** 2, -1, keepdims=True)
        return (z - mu) * jax.lax.rsqrt(var + eps) * g + b

    x2 = src.reshape(S * B, D)
    h = ln(x2, p["ln2_g"], p["ln2_b"])
    qkv = h @ p["w_qkv"] + p["b_qkv"]
    q, k, v = jnp.split(qkv, 3, axis=-1)

    def heads(z):
        return jnp.transpose(z.reshape(S, B, nhead, hd), (1, 2, 0, 3))

    q, k, v = heads(q), heads(k), heads(v)
    s = jnp.einsum("bhqd,bhkd->bhqk", q, k) / float(hd) ** 0.5
    a = jax.nn.softmax(s, axis=-1)
    ctx = jnp.einsum("bhqk,bhkd->bhqd", a, v)
    ctx = jnp.transpose(ctx, (2, 0, 1, 3)).reshape(S * B, D)
    r1 = ctx @ p["w_out"] + p["b_out"] + h
    h2 = ln(r1, p["ln1_g"], p["ln1_b"])
    f = jnp.maximum(h2 @ p["w_ff1"] + p["b_ff1"], 0.0)
    r2 = f @ p["w_ff2"] + p["b_ff2"] + h2
    return r2.reshape(S, B, D)


def init_params(key, d_model, dim_ff, dtype=jnp.float32):
    ks = jax.random.split(key, 6)
    sc = 0.05
    return dict(
        ln2_g=jnp.ones((1, d_model), dtype), ln2_b=jnp.zeros((1, d_model), dtype),
        ln1_g=jnp.ones((1, d_model), dtype), ln1_b=jnp.zeros((1, d_model), dtype),
        w_qkv=sc * jax.random.normal(ks[0], (d_model, 3 * d_model), dtype),
        b_qkv=sc * jax.random.normal(ks[1], (1, 3 * d_model), dtype),
        w_out=sc * jax.random.normal(ks[2], (d_model, d_model), dtype),
        b_out=jnp.zeros((1, d_model), dtype),
        w_ff1=sc * jax.random.normal(ks[3], (d_model, dim_ff), dtype),
        b_ff1=sc * jax.random.normal(ks[4], (1, dim_ff), dtype),
        w_ff2=sc * jax.random.normal(ks[5], (dim_ff, d_model), dtype),
        b_ff2=jnp.zeros((1, d_model), dtype),
    )


if __name__ == "__main__":
    # seq=16, batch=2, d_model=128 (lane-aligned), nhead=4, dim_feedforward=256
    S, B, D, H, FF = 16, 2, 128, 4, 256
    key = jax.random.PRNGKey(0)
    kx, kp = jax.random.split(key)
    src = jax.random.normal(kx, (S, B, D), jnp.float32)
    params = init_params(kp, D, FF)

    try:
        out = transformer_encoder_layer(src, params, nhead=H)
    except Exception:
        # Fallback for JAX builds where pipeline_mode=pl.Buffered(1)
        # (single-buffered resident weights) is not supported.
        out = transformer_encoder_layer(src, params, nhead=H,
                                        single_buffer_weights=False)
    out = jax.block_until_ready(out)

    ref = reference(src, params, nhead=H)
    assert out.shape == (S, B, D) and out.dtype == jnp.float32
    err = float(jnp.max(jnp.abs(out - ref)))
    scale = float(jnp.max(jnp.abs(ref))) + 1e-6
    # bf16 matmul operands (fp32 accumulation), bf16 intermediates and the
    # approximate softmax reciprocal give a small (few-percent worst case)
    # deviation from the pure-f32 reference.
    assert err / scale < 8e-2, f"relative err {err / scale} (abs {err})"

    print("KERNEL_OK")
</pallas_src>

<mosaic_0001>
module attributes {stable_mosaic.version = 11 : i64} {
  func.func @_ln_qkv_kernel(%arg0: i32, %arg1: memref<16x128xf32, #tpu.memory_space<vmem>>, %arg2: memref<1x128xf32, #tpu.memory_space<vmem>>, %arg3: memref<1x128xf32, #tpu.memory_space<vmem>>, %arg4: memref<128x384xbf16, #tpu.memory_space<vmem>>, %arg5: memref<1x384xf32, #tpu.memory_space<vmem>>, %arg6: memref<16x128xbf16, #tpu.memory_space<vmem>>, %arg7: memref<16x384xbf16, #tpu.memory_space<vmem>>) attributes {dimension_semantics = [#tpu.dimension_semantics<parallel>], iteration_bounds = array<i64: 2>, scalar_prefetch = 0 : i64, scratch_operands = 0 : i64, tpu.core_type = #tpu.core_type<tc>, window_params = [{transform_indices = @transform_0, window_bounds = array<i64: 16, 128>}, {pipeline_mode = #tpu.pipeline_mode<synchronous>, transform_indices = @transform_1, window_bounds = array<i64: 1, 128>}, {pipeline_mode = #tpu.pipeline_mode<synchronous>, transform_indices = @transform_2, window_bounds = array<i64: 1, 128>}, {pipeline_mode = #tpu.pipeline_mode<synchronous>, transform_indices = @transform_3, window_bounds = array<i64: 128, 384>}, {pipeline_mode = #tpu.pipeline_mode<synchronous>, transform_indices = @transform_4, window_bounds = array<i64: 1, 384>}, {transform_indices = @transform_5, window_bounds = array<i64: 16, 128>}, {transform_indices = @transform_6, window_bounds = array<i64: 16, 384>}]} {
    %c0 = arith.constant 0 : index
    %c0_0 = arith.constant 0 : index
    %0 = vector.load %arg1[%c0, %c0_0] : memref<16x128xf32, #tpu.memory_space<vmem>>, vector<16x128xf32>
    %cst = arith.constant dense<0.000000e+00> : vector<16xf32>
    %1 = vector.multi_reduction <add>, %0, %cst [1] : vector<16x128xf32> to vector<16xf32>
    %2 = vector.shape_cast %1 : vector<16xf32> to vector<16x1xf32>
    %cst_1 = arith.constant 1.280000e+02 : f32
    %3 = vector.broadcast %cst_1 : f32 to vector<16x1xf32>
    %4 = arith.divf %2, %3 : vector<16x1xf32>
    %5 = vector.broadcast %4 : vector<16x1xf32> to vector<16x128xf32>
    %6 = arith.subf %0, %5 : vector<16x128xf32>
    %7 = arith.mulf %6, %6 : vector<16x128xf32>
    %cst_2 = arith.constant dense<0.000000e+00> : vector<16xf32>
    %8 = vector.multi_reduction <add>, %7, %cst_2 [1] : vector<16x128xf32> to vector<16xf32>
    %9 = vector.shape_cast %8 : vector<16xf32> to vector<16x1xf32>
    %cst_3 = arith.constant 1.280000e+02 : f32
    %10 = vector.broadcast %cst_3 : f32 to vector<16x1xf32>
    %11 = arith.divf %9, %10 : vector<16x1xf32>
    %cst_4 = arith.constant 9.99999974E-6 : f32
    %12 = vector.broadcast %cst_4 : f32 to vector<16x1xf32>
    %13 = arith.addf %11, %12 : vector<16x1xf32>
    %14 = math.rsqrt %13 : vector<16x1xf32>
    %15 = vector.broadcast %14 : vector<16x1xf32> to vector<16x128xf32>
    %16 = arith.mulf %6, %15 : vector<16x128xf32>
    %c0_5 = arith.constant 0 : index
    %c0_6 = arith.constant 0 : index
    %17 = vector.load %arg2[%c0_5, %c0_6] : memref<1x128xf32, #tpu.memory_space<vmem>>, vector<1x128xf32>
    %18 = vector.broadcast %17 : vector<1x128xf32> to vector<16x128xf32>
    %19 = arith.mulf %16, %18 : vector<16x128xf32>
    %c0_7 = arith.constant 0 : index
    %c0_8 = arith.constant 0 : index
    %20 = vector.load %arg3[%c0_7, %c0_8] : memref<1x128xf32, #tpu.memory_space<vmem>>, vector<1x128xf32>
    %21 = vector.broadcast %20 : vector<1x128xf32> to vector<16x128xf32>
    %22 = arith.addf %19, %21 : vector<16x128xf32>
    %23 = arith.truncf %22 : vector<16x128xf32> to vector<16x128xbf16>
    %c0_9 = arith.constant 0 : index
    %c0_10 = arith.constant 0 : index
    %24 = vector.load %arg6[%c0_9, %c0_10] : memref<16x128xbf16, #tpu.memory_space<vmem>>, vector<16x128xbf16>
    tpu.vector_store %arg6[%c0_9, %c0_10], %23 {strides = array<i32>} : memref<16x128xbf16, #tpu.memory_space<vmem>>, vector<16x128xbf16>,
    %25 = arith.truncf %22 : vector<16x128xf32> to vector<16x128xbf16>
    %c0_11 = arith.constant 0 : index
    %c0_12 = arith.constant 0 : index
    %26 = vector.load %arg4[%c0_11, %c0_12] : memref<128x384xbf16, #tpu.memory_space<vmem>>, vector<128x384xbf16>
    %cst_13 = arith.constant dense<0.000000e+00> : vector<16x384xf32>
    %27 = tpu.matmul %25, %26, %cst_13 {dimension_numbers = #tpu.dot_dimension_numbers<[1], [0], [0], [1], [0, 0, 1, 1], [], []>} : vector<16x128xbf16>, vector<128x384xbf16>, vector<16x384xf32> -> vector<16x384xf32>
    %c0_14 = arith.constant 0 : index
    %c0_15 = arith.constant 0 : index
    %28 = vector.load %arg5[%c0_14, %c0_15] : memref<1x384xf32, #tpu.memory_space<vmem>>, vector<1x384xf32>
    %29 = vector.broadcast %28 : vector<1x384xf32> to vector<16x384xf32>
    %30 = arith.addf %27, %29 : vector<16x384xf32>
    %31 = arith.truncf %30 : vector<16x384xf32> to vector<16x384xbf16>
    %c0_16 = arith.constant 0 : index
    %c0_17 = arith.constant 0 : index
    %32 = vector.load %arg7[%c0_16, %c0_17] : memref<16x384xbf16, #tpu.memory_space<vmem>>, vector<16x384xbf16>
    tpu.vector_store %arg7[%c0_16, %c0_17], %31 {strides = array<i32>} : memref<16x384xbf16, #tpu.memory_space<vmem>>, vector<16x384xbf16>,
    return
  }
  func.func @transform_0(%arg0: i32) -> (i32, i32) {
    %c0_i32 = arith.constant 0 : i32
    %c0_i32_0 = arith.constant 0 : i32
    return %arg0, %c0_i32 : i32, i32
  }
  func.func @transform_1(%arg0: i32) -> (i32, i32) {
    %c0_i32 = arith.constant 0 : i32
    %c0_i32_0 = arith.constant 0 : i32
    %c0_i32_1 = arith.constant 0 : i32
    return %c0_i32, %c0_i32_0 : i32, i32
  }
  func.func @transform_2(%arg0: i32) -> (i32, i32) {
    %c0_i32 = arith.constant 0 : i32
    %c0_i32_0 = arith.constant 0 : i32
    %c0_i32_1 = arith.constant 0 : i32
    return %c0_i32, %c0_i32_0 : i32, i32
  }
  func.func @transform_3(%arg0: i32) -> (i32, i32) {
    %c0_i32 = arith.constant 0 : i32
    %c0_i32_0 = arith.constant 0 : i32
    %c0_i32_1 = arith.constant 0 : i32
    return %c0_i32, %c0_i32_0 : i32, i32
  }
  func.func @transform_4(%arg0: i32) -> (i32, i32) {
    %c0_i32 = arith.constant 0 : i32
    %c0_i32_0 = arith.constant 0 : i32
    %c0_i32_1 = arith.constant 0 : i32
    return %c0_i32, %c0_i32_0 : i32, i32
  }
  func.func @transform_5(%arg0: i32) -> (i32, i32) {
    %c0_i32 = arith.constant 0 : i32
    %c0_i32_0 = arith.constant 0 : i32
    return %arg0, %c0_i32 : i32, i32
  }
  func.func @transform_6(%arg0: i32) -> (i32, i32) {
    %c0_i32 = arith.constant 0 : i32
    %c0_i32_0 = arith.constant 0 : i32
    return %arg0, %c0_i32 : i32, i32
  }
}

module attributes {stable_mosaic.version = 11 : i64} {
  func.func @_ln_qkv_kernel(%arg0: i32, %arg1: memref<16x128xf32, #tpu.memory_space<vmem>>, %arg2: memref<1x128xf32, #tpu.memory_space<vmem>>, %arg3: memref<1x128xf32, #tpu.memory_space<vmem>>, %arg4: memref<128x384xbf16, #tpu.memory_space<vmem>>, %arg5: memref<1x384xf32, #tpu.memory_space<vmem>>, %arg6: memref<16x128xbf16, #tpu.memory_space<vmem>>, %arg7: memref<16x384xbf16, #tpu.memory_space<vmem>>) attributes {dimension_semantics = [#tpu.dimension_semantics<parallel>], iteration_bounds = array<i64: 2>, scalar_prefetch = 0 : i64, scratch_operands = 0 : i64, tpu.core_type = #tpu.core_type<tc>, window_params = [{transform_indices = @transform_0, window_bounds = array<i64: 16, 128>}, {pipeline_mode = #tpu.pipeline_mode<synchronous>, transform_indices = @transform_1, window_bounds = array<i64: 1, 128>}, {pipeline_mode = #tpu.pipeline_mode<synchronous>, transform_indices = @transform_2, window_bounds = array<i64: 1, 128>}, {pipeline_mode = #tpu.pipeline_mode<synchronous>, transform_indices = @transform_3, window_bounds = array<i64: 128, 384>}, {pipeline_mode = #tpu.pipeline_mode<synchronous>, transform_indices = @transform_4, window_bounds = array<i64: 1, 384>}, {transform_indices = @transform_5, window_bounds = array<i64: 16, 128>}, {transform_indices = @transform_6, window_bounds = array<i64: 16, 384>}]} {
    %c0 = arith.constant 0 : index
    %c0_0 = arith.constant 0 : index
    %0 = vector.load %arg1[%c0, %c0_0] : memref<16x128xf32, #tpu.memory_space<vmem>>, vector<16x128xf32>
    %cst = arith.constant dense<0.000000e+00> : vector<16xf32>
    %1 = vector.multi_reduction <add>, %0, %cst [1] : vector<16x128xf32> to vector<16xf32>
    %2 = vector.shape_cast %1 : vector<16xf32> to vector<16x1xf32>
    %cst_1 = arith.constant 1.280000e+02 : f32
    %3 = vector.broadcast %cst_1 : f32 to vector<16x1xf32>
    %4 = arith.divf %2, %3 : vector<16x1xf32>
    %5 = vector.broadcast %4 : vector<16x1xf32> to vector<16x128xf32>
    %6 = arith.subf %0, %5 : vector<16x128xf32>
    %7 = arith.mulf %6, %6 : vector<16x128xf32>
    %cst_2 = arith.constant dense<0.000000e+00> : vector<16xf32>
    %8 = vector.multi_reduction <add>, %7, %cst_2 [1] : vector<16x128xf32> to vector<16xf32>
    %9 = vector.shape_cast %8 : vector<16xf32> to vector<16x1xf32>
    %cst_3 = arith.constant 1.280000e+02 : f32
    %10 = vector.broadcast %cst_3 : f32 to vector<16x1xf32>
    %11 = arith.divf %9, %10 : vector<16x1xf32>
    %cst_4 = arith.constant 9.99999974E-6 : f32
    %12 = vector.broadcast %cst_4 : f32 to vector<16x1xf32>
    %13 = arith.addf %11, %12 : vector<16x1xf32>
    %14 = math.rsqrt %13 : vector<16x1xf32>
    %15 = vector.broadcast %14 : vector<16x1xf32> to vector<16x128xf32>
    %16 = arith.mulf %6, %15 : vector<16x128xf32>
    %c0_5 = arith.constant 0 : index
    %c0_6 = arith.constant 0 : index
    %17 = vector.load %arg2[%c0_5, %c0_6] : memref<1x128xf32, #tpu.memory_space<vmem>>, vector<1x128xf32>
    %18 = vector.broadcast %17 : vector<1x128xf32> to vector<16x128xf32>
    %19 = arith.mulf %16, %18 : vector<16x128xf32>
    %c0_7 = arith.constant 0 : index
    %c0_8 = arith.constant 0 : index
    %20 = vector.load %arg3[%c0_7, %c0_8] : memref<1x128xf32, #tpu.memory_space<vmem>>, vector<1x128xf32>
    %21 = vector.broadcast %20 : vector<1x128xf32> to vector<16x128xf32>
    %22 = arith.addf %19, %21 : vector<16x128xf32>
    %23 = arith.truncf %22 : vector<16x128xf32> to vector<16x128xbf16>
    %c0_9 = arith.constant 0 : index
    %c0_10 = arith.constant 0 : index
    %24 = vector.load %arg6[%c0_9, %c0_10] : memref<16x128xbf16, #tpu.memory_space<vmem>>, vector<16x128xbf16>
    tpu.vector_store %arg6[%c0_9, %c0_10], %23 {strides = array<i32>} : memref<16x128xbf16, #tpu.memory_space<vmem>>, vector<16x128xbf16>,
    %25 = arith.truncf %22 : vector<16x128xf32> to vector<16x128xbf16>
    %c0_11 = arith.constant 0 : index
    %c0_12 = arith.constant 0 : index
    %26 = vector.load %arg4[%c0_11, %c0_12] : memref<128x384xbf16, #tpu.memory_space<vmem>>, vector<128x384xbf16>
    %cst_13 = arith.constant dense<0.000000e+00> : vector<16x384xf32>
    %27 = tpu.matmul %25, %26, %cst_13 {dimension_numbers = #tpu.dot_dimension_numbers<[1], [0], [0], [1], [0, 0, 1, 1], [], []>} : vector<16x128xbf16>, vector<128x384xbf16>, vector<16x384xf32> -> vector<16x384xf32>
    %c0_14 = arith.constant 0 : index
    %c0_15 = arith.constant 0 : index
    %28 = vector.load %arg5[%c0_14, %c0_15] : memref<1x384xf32, #tpu.memory_space<vmem>>, vector<1x384xf32>
    %29 = vector.broadcast %28 : vector<1x384xf32> to vector<16x384xf32>
    %30 = arith.addf %27, %29 : vector<16x384xf32>
    %31 = arith.truncf %30 : vector<16x384xf32> to vector<16x384xbf16>
    %c0_16 = arith.constant 0 : index
    %c0_17 = arith.constant 0 : index
    %32 = vector.load %arg7[%c0_16, %c0_17] : memref<16x384xbf16, #tpu.memory_space<vmem>>, vector<16x384xbf16>
    tpu.vector_store %arg7[%c0_16, %c0_17], %31 {strides = array<i32>} : memref<16x384xbf16, #tpu.memory_space<vmem>>, vector<16x384xbf16>,
    return
  }
  func.func @transform_0(%arg0: i32) -> (i32, i32) {
    %c0_i32 = arith.constant 0 : i32
    %c0_i32_0 = arith.constant 0 : i32
    return %arg0, %c0_i32 : i32, i32
  }
  func.func @transform_1(%arg0: i32) -> (i32, i32) {
    %c0_i32 = arith.constant 0 : i32
    %c0_i32_0 = arith.constant 0 : i32
    %c0_i32_1 = arith.constant 0 : i32
    return %c0_i32, %c0_i32_0 : i32, i32
  }
  func.func @transform_2(%arg0: i32) -> (i32, i32) {
    %c0_i32 = arith.constant 0 : i32
    %c0_i32_0 = arith.constant 0 : i32
    %c0_i32_1 = arith.constant 0 : i32
    return %c0_i32, %c0_i32_0 : i32, i32
  }
  func.func @transform_3(%arg0: i32) -> (i32, i32) {
    %c0_i32 = arith.constant 0 : i32
    %c0_i32_0 = arith.constant 0 : i32
    %c0_i32_1 = arith.constant 0 : i32
    return %c0_i32, %c0_i32_0 : i32, i32
  }
  func.func @transform_4(%arg0: i32) -> (i32, i32) {
    %c0_i32 = arith.constant 0 : i32
    %c0_i32_0 = arith.constant 0 : i32
    %c0_i32_1 = arith.constant 0 : i32
    return %c0_i32, %c0_i32_0 : i32, i32
  }
  func.func @transform_5(%arg0: i32) -> (i32, i32) {
    %c0_i32 = arith.constant 0 : i32
    %c0_i32_0 = arith.constant 0 : i32
    return %arg0, %c0_i32 : i32, i32
  }
  func.func @transform_6(%arg0: i32) -> (i32, i32) {
    %c0_i32 = arith.constant 0 : i32
    %c0_i32_0 = arith.constant 0 : i32
    return %arg0, %c0_i32 : i32, i32
  }
}

</mosaic_0001>

<llo_original>
// kernel: tpu_custom_call.1
$region0: #{tpu_custom_call.1}
  #allocation0 [shape = 'u32[]', space=smem, size = 0x4, offset = 0x4, fixed_abs, tag = 'smem constant byte address 0x4 - core index']
  #allocation1 [shape = 'u32[72,128]{1,0:T(1,128)}', space=vmem, size = 0x9000, scoped, tag = 'internal scratch']
  %s0 = inlined_call_operand.hbm [shape: f32[32,128], index: 0, kind: input, shape index: {}]
  %s1 = inlined_call_operand.hbm [shape: f32[1,128], index: 1, kind: input, shape index: {}]
  %s2 = inlined_call_operand.hbm [shape: f32[1,128], index: 2, kind: input, shape index: {}]
  %s3 = inlined_call_operand.hbm [shape: bf16[128,384], index: 3, kind: input, shape index: {}]
  %s4 = inlined_call_operand.vmem [shape: f32[1,384], index: 4, kind: input, shape index: {}]
  %s5 = inlined_call_operand.hbm [shape: bf16[32,128], index: 5, kind: output, shape index: {0}]
  %s6 = inlined_call_operand.hbm [shape: bf16[32,384], index: 6, kind: output, shape index: {1}]
  %7 = xla_tuple %s5, %s6
  %s8 = sld [smem:[#allocation0]]
  $region77: #{tpu_custom_call.1} parent=0
    _
  %s10 = ssub.s32 1, %s8
  %s11 = scalar_select 0, %s10, %s8
  $region1: #{tpu_custom_call.1} parent=0
    #allocation2 [shape = 'u8[16384]{0}', space=vmem, size = 0x4000, scoped, tag = 'input window, operand 0']
    #allocation3 [shape = 's32[2]{0}', space=sflag, size = 0x8, scoped, tag = 'scoped memory for tpu_custom_call.1']
    #allocation4 [shape = 's32[2]{0}', space=sflag, size = 0x8, scoped, tag = 'scoped memory for tpu_custom_call.1']
    #allocation5 [shape = 'u8[512]{0}', space=vmem, size = 0x400, scoped, tag = 'input window, operand 1, single buffered']
    #allocation6 [shape = 's32[1]{0}', space=sflag, size = 0x4, scoped, tag = 'scoped memory for tpu_custom_call.1']
    #allocation7 [shape = 'u8[512]{0}', space=vmem, size = 0x400, scoped, tag = 'input window, operand 2, single buffered']
    #allocation8 [shape = 'u8[98304]{0}', space=vmem, size = 0x18000, scoped, tag = 'input window, operand 3, single buffered']
    #allocation9 [shape = 's32[1]{0}', space=sflag, size = 0x4, scoped, tag = 'scoped memory for tpu_custom_call.1']
    #allocation10 [shape = 'u8[8192]{0}', space=vmem, size = 0x2000, scoped, tag = 'output window, operand 0']
    #allocation11 [shape = 'u8[24576]{0}', space=vmem, size = 0x6000, scoped, tag = 'output window, operand 1']
    #allocation12 [shape = 's32[2]{0}', space=sflag, size = 0x8, scoped, tag = 'scoped memory for tpu_custom_call.1']
    %12 = vsyncpa [#allocation3], 0
    %s13 = scalar_lea.sflag [#allocation3], 1
    %14 = vsyncpa %s13, 0
    %15 = vsyncpa [#allocation6], 0
    %16 = vsyncpa [#allocation9], 0
    %17 = vsyncpa [#allocation4], 0
    %s18 = scalar_lea.sflag [#allocation4], 1
    %19 = vsyncpa %s18, 0
    %20 = vsyncpa [#allocation12], 0
    %s21 = scalar_lea.sflag [#allocation12], 1
    %22 = vsyncpa %s21, 0
    loop: start=0, step=1, limit=4
    $region2: #{tpu_custom_call.1} parent=1 // loop_pre_header
      _
    $region3: #{tpu_custom_call.1} parent=1 // loop_header
      %s24 = sphi 0, %s28
      %p25 = scmp.ge.s32.totalorder %s24, 4
      %s34 = sphi 0, %s36
      %s37 = sphi 0, %s34
      %s38 = sphi 0, %s37
      %s54 = sphi 0, %s38
      %s58 = sphi 0, %s58
      %s60 = sphi 0, %s58
      %s61 = sphi 0, %s60
      %s75 = sphi 0, %s61
      %s79 = sphi 0, %s79
      %s81 = sphi 0, %s79
      %s82 = sphi 0, %s81
      %s96 = sphi 0, %s82
      %s100 = sphi 0, %s100
      %s102 = sphi 0, %s100
      %s103 = sphi 0, %s102
      %s117 = sphi 0, %s103
      %s121 = sphi 0, %s121
      %s123 = sphi 0, %s121
      %s124 = sphi 0, %s123
      %s138 = sphi 0, %s124
      %s144 = sphi 0, %s146
      %s147 = sphi 0, %s144
      %s148 = sphi 0, %s147
      %s164 = sphi 0, %s148
      %s170 = sphi 0, %s172
      %s173 = sphi 0, %s170
      %s174 = sphi 0, %s173
      %s190 = sphi 0, %s174
    $region4: #{tpu_custom_call.1} parent=1 // loop_header_branch
      %27 = sbr.rel (%p25) target = $region8
    $region5: #{tpu_custom_call.1} parent=1 // loop_body
      %s29 = ssub.s32 %s24, 1
      %s30 = ssub.s32 %s24, 2
      %s31 = sadd.s32 %s24, 1
      %s32 = ssub.s32 %s24, %s31
      %p33 = scmp.eq.s32.totalorder %s32, 0
      %s35 = sadd.s32 %s34, 1
      %s36 = scalar_select %p33, %s34, %s35
      %p39 = pneg %p33
      %p40 = scmp.eq.s32.totalorder %s24, 1
      %p41 = por %p39, %p40
      %p42 = scmp.ne.s32.totalorder %s34, %s37
      %p43 = scmp.eq.s32.totalorder %s24, 0
      %p44 = por %p42, %p43
      %p45 = scmp.ne.s32.totalorder %s34, %s37
      %p46 = scmp.eq.s32.totalorder %s29, 1
      %p47 = por %p45, %p46
      %p48 = scmp.ne.s32.totalorder %s37, %s38
      %p49 = scmp.eq.s32.totalorder %s29, 0
      %p50 = por %p48, %p49
      %p51 = scmp.ne.s32.totalorder %s37, %s38
      %p52 = scmp.eq.s32.totalorder %s30, 1
      %p53 = por %p51, %p52
      %p55 = scmp.ne.s32.totalorder %s38, %s54
      %p56 = scmp.eq.s32.totalorder %s30, 0
      %p57 = por %p55, %p56
      %s59 = sadd.s32 %s58, 1
      %p62 = scmp.eq.s32.totalorder %s24, 1
      %p63 = scmp.ne.s32.totalorder %s58, %s60
      %p64 = scmp.eq.s32.totalorder %s24, 0
      %p65 = por %p63, %p64
      %p66 = scmp.ne.s32.totalorder %s58, %s60
      %p67 = scmp.eq.s32.totalorder %s29, 1
      %p68 = por %p66, %p67
      %p69 = scmp.ne.s32.totalorder %s60, %s61
      %p70 = scmp.eq.s32.totalorder %s29, 0
      %p71 = por %p69, %p70
      %p72 = scmp.ne.s32.totalorder %s60, %s61
      %p73 = scmp.eq.s32.totalorder %s30, 1
      %p74 = por %p72, %p73
      %p76 = scmp.ne.s32.totalorder %s61, %s75
      %p77 = scmp.eq.s32.totalorder %s30, 0
      %p78 = por %p76, %p77
      %s80 = sadd.s32 %s79, 1
      %p83 = scmp.eq.s32.totalorder %s24, 1
      %p84 = scmp.ne.s32.totalorder %s79, %s81
      %p85 = scmp.eq.s32.totalorder %s24, 0
      %p86 = por %p84, %p85
      %p87 = scmp.ne.s32.totalorder %s79, %s81
      %p88 = scmp.eq.s32.totalorder %s29, 1
      %p89 = por %p87, %p88
      %p90 = scmp.ne.s32.totalorder %s81, %s82
      %p91 = scmp.eq.s32.totalorder %s29, 0
      %p92 = por %p90, %p91
      %p93 = scmp.ne.s32.totalorder %s81, %s82
      %p94 = scmp.eq.s32.totalorder %s30, 1
      %p95 = por %p93, %p94
      %p97 = scmp.ne.s32.totalorder %s82, %s96
      %p98 = scmp.eq.s32.totalorder %s30, 0
      %p99 = por %p97, %p98
      %s101 = sadd.s32 %s100, 1
      %p104 = scmp.eq.s32.totalorder %s24, 1
      %p105 = scmp.ne.s32.totalorder %s100, %s102
      %p106 = scmp.eq.s32.totalorder %s24, 0
      %p107 = por %p105, %p106
      %p108 = scmp.ne.s32.totalorder %s100, %s102
      %p109 = scmp.eq.s32.totalorder %s29, 1
      %p110 = por %p108, %p109
      %p111 = scmp.ne.s32.totalorder %s102, %s103
      %p112 = scmp.eq.s32.totalorder %s29, 0
      %p113 = por %p111, %p112
      %p114 = scmp.ne.s32.totalorder %s102, %s103
      %p115 = scmp.eq.s32.totalorder %s30, 1
      %p116 = por %p114, %p115
      %p118 = scmp.ne.s32.totalorder %s103, %s117
      %p119 = scmp.eq.s32.totalorder %s30, 0
      %p120 = por %p118, %p119
      %s122 = sadd.s32 %s121, 1
      %p125 = scmp.eq.s32.totalorder %s24, 1
      %p126 = scmp.ne.s32.totalorder %s121, %s123
      %p127 = scmp.eq.s32.totalorder %s24, 0
      %p128 = por %p126, %p127
      %p129 = scmp.ne.s32.totalorder %s121, %s123
      %p130 = scmp.eq.s32.totalorder %s29, 1
      %p131 = por %p129, %p130
      %p132 = scmp.ne.s32.totalorder %s123, %s124
      %p133 = scmp.eq.s32.totalorder %s29, 0
      %p134 = por %p132, %p133
      %p135 = scmp.ne.s32.totalorder %s123, %s124
      %p136 = scmp.eq.s32.totalorder %s30, 1
      %p137 = por %p135, %p136
      %p139 = scmp.ne.s32.totalorder %s124, %s138
      %p140 = scmp.eq.s32.totalorder %s30, 0
      %p141 = por %p139, %p140
      %s142 = ssub.s32 %s24, %s31
      %p143 = scmp.eq.s32.totalorder %s142, 0
      %s145 = sadd.s32 %s144, 1
      %s146 = scalar_select %p143, %s144, %s145
      %p149 = pneg %p143
      %p150 = scmp.eq.s32.totalorder %s24, 1
      %p151 = por %p149, %p150
      %p152 = scmp.ne.s32.totalorder %s144, %s147
      %p153 = scmp.eq.s32.totalorder %s24, 0
      %p154 = por %p152, %p153
      %p155 = scmp.ne.s32.totalorder %s144, %s147
      %p156 = scmp.eq.s32.totalorder %s29, 1
      %p157 = por %p155, %p156
      %p158 = scmp.ne.s32.totalorder %s147, %s148
      %p159 = scmp.eq.s32.totalorder %s29, 0
      %p160 = por %p158, %p159
      %p161 = scmp.ne.s32.totalorder %s147, %s148
      %p162 = scmp.eq.s32.totalorder %s30, 1
      %p163 = por %p161, %p162
      %p165 = scmp.ne.s32.totalorder %s148, %s164
      %p166 = scmp.eq.s32.totalorder %s30, 0
      %p167 = por %p165, %p166
      %s168 = ssub.s32 %s24, %s31
      %p169 = scmp.eq.s32.totalorder %s168, 0
      %s171 = sadd.s32 %s170, 1
      %s172 = scalar_select %p169, %s170, %s171
      %p175 = pneg %p169
      %p176 = scmp.eq.s32.totalorder %s24, 1
      %p177 = por %p175, %p176
      %p178 = scmp.ne.s32.totalorder %s170, %s173
      %p179 = scmp.eq.s32.totalorder %s24, 0
      %p180 = por %p178, %p179
      %p181 = scmp.ne.s32.totalorder %s170, %s173
      %p182 = scmp.eq.s32.totalorder %s29, 1
      %p183 = por %p181, %p182
      %p184 = scmp.ne.s32.totalorder %s173, %s174
      %p185 = scmp.eq.s32.totalorder %s29, 0
      %p186 = por %p184, %p185
      %p187 = scmp.ne.s32.totalorder %s173, %s174
      %p188 = scmp.eq.s32.totalorder %s30, 1
      %p189 = por %p187, %p188
      %p191 = scmp.ne.s32.totalorder %s174, %s190
      %p192 = scmp.eq.s32.totalorder %s30, 0
      %p193 = por %p191, %p192
      %p194 = scmp.le.s32.totalorder 1, %s24
      %p195 = scmp.lt.s32.totalorder %s24, 3
      %p196 = pnand %p194, %p195
      %p197 = pneg %p196
      // Predicated region
      $region9: #{tpu_custom_call.1} parent=5 // pred_check
        _
      $region10: #{tpu_custom_call.1} parent=5 // pred_check_branch
        %199 = sbr.rel (%p196) target = $region12
      $region11: #{tpu_custom_call.1} parent=5 // pred_region
        %s200 = ssub.s32 %s24, 1
        // Predicated region
        $region13: #{tpu_custom_call.1} parent=11 // pred_check
          %p201 = pneg %p71
        $region14: #{tpu_custom_call.1} parent=11 // pred_check_branch
          %203 = sbr.rel (%p201) target = $region16
        $region15: #{tpu_custom_call.1} parent=11 // pred_region
          %205 = vsyncadd [#allocation6], 0
          %s207 = sshll.u32 %s1, 4
          %s208 = int_to_ptr.hbm [resolvable:$true] %s207
          %s209 = sshll.u32 [#allocation5], 4
          %s210 = int_to_ptr.vmem [resolvable:$true] %s209
          %212 = dma.hbm_to_vmem [thread:$0]  %s208, 16, %s210, [#allocation6]
        $region16: #{tpu_custom_call.1} parent=11 // pred_fallthru
          _
        // Predicated region
        $region17: #{tpu_custom_call.1} parent=11 // pred_check
          %p213 = pneg %p92
        $region18: #{tpu_custom_call.1} parent=11 // pred_check_branch
          %215 = sbr.rel (%p213) target = $region20
        $region19: #{tpu_custom_call.1} parent=11 // pred_region
          %217 = vsyncadd [#allocation6], 0
          %s219 = sshll.u32 %s2, 4
          %s220 = int_to_ptr.hbm [resolvable:$true] %s219
          %s221 = sshll.u32 [#allocation7], 4
          %s222 = int_to_ptr.vmem [resolvable:$true] %s221
          %224 = dma.hbm_to_vmem [thread:$0]  %s220, 16, %s222, [#allocation6]
        $region20: #{tpu_custom_call.1} parent=11 // pred_fallthru
          _
        // Predicated region
        $region21: #{tpu_custom_call.1} parent=11 // pred_check
          %p225 = pneg %p113
        $region22: #{tpu_custom_call.1} parent=11 // pred_check_branch
          %227 = sbr.rel (%p225) target = $region24
        $region23: #{tpu_custom_call.1} parent=11 // pred_region
          %229 = vsyncadd [#allocation9], 0
          %s230 = sshll.u32 %s3, 4
          %s231 = int_to_ptr.hbm [resolvable:$true] %s230
          %s232 = sshll.u32 [#allocation8], 4
          %s233 = int_to_ptr.vmem [resolvable:$true] %s232
          %238 = dma.hbm_to_vmem [thread:$0]  %s231, 3072, %s233, [#allocation9], 192, 192, 12
        $region24: #{tpu_custom_call.1} parent=11 // pred_fallthru
          _
        // Predicated region
        $region25: #{tpu_custom_call.1} parent=11 // pred_check
          %p239 = pneg %p134
        $region26: #{tpu_custom_call.1} parent=11 // pred_check_branch
          %241 = sbr.rel (%p239) target = $region28
        $region27: #{tpu_custom_call.1} parent=11 // pred_region
          _
        $region28: #{tpu_custom_call.1} parent=11 // pred_fallthru
          _
      $region12: #{tpu_custom_call.1} parent=5 // pred_fallthru
        _
      %p242 = scmp.lt.s32.totalorder %s24, 2
      // Predicated region
      $region29: #{tpu_custom_call.1} parent=5 // pred_check
        %p243 = pneg %p242
      $region30: #{tpu_custom_call.1} parent=5 // pred_check_branch
        %245 = sbr.rel (%p243) target = $region32
      $region31: #{tpu_custom_call.1} parent=5 // pred_region
        // Predicated region
        $region33: #{tpu_custom_call.1} parent=31 // pred_check
          %p246 = pneg %p44
        $region34: #{tpu_custom_call.1} parent=31 // pred_check_branch
          %248 = sbr.rel (%p246) target = $region36
        $region35: #{tpu_custom_call.1} parent=31 // pred_region
          %s249 = sand.u32 %s34, 1
          %s250 = scalar_lea.sflag [#allocation3], %s249
          %s251 = sand.u32 %s34, 1
          %s252 = smul.addr %s251, 16
          %s253 = scalar_lea.vmem [#allocation2], %s252
          %s254 = smul.u32 2, %s24
          %256 = vsyncadd %s250, 0
          %s257 = smul.addr %s254, 8
          %s258 = scalar_lea.hbm %s0, %s257
          %s259 = sshll.u32 %s258, 4
          %s260 = int_to_ptr.hbm [resolvable:$true] %s259
          %s261 = sshll.u32 %s253, 4
          %s262 = int_to_ptr.vmem [resolvable:$true] %s261
          %267 = dma.hbm_to_vmem [thread:$0]  %s260, 256, %s262, %s250, 128, 128, 8
        $region36: #{tpu_custom_call.1} parent=31 // pred_fallthru
          _
      $region32: #{tpu_custom_call.1} parent=5 // pred_fallthru
        _
      %p268 = scmp.le.s32.totalorder 1, %s24
      %p269 = scmp.lt.s32.totalorder %s24, 3
      %p270 = pnand %p268, %p269
      %p271 = pneg %p270
      // Predicated region
      $region37: #{tpu_custom_call.1} parent=5 // pred_check
        _
      $region38: #{tpu_custom_call.1} parent=5 // pred_check_branch
        %273 = sbr.rel (%p270) target = $region40
      $region39: #{tpu_custom_call.1} parent=5 // pred_region
        %s274 = ssub.s32 %s24, 1
        %s275 = sand.u32 %s37, 1
        %s276 = scalar_lea.sflag [#allocation3], %s275
        %s277 = sand.u32 %s37, 1
        %s278 = smul.addr %s277, 16
        %s279 = scalar_lea.vmem [#allocation2], %s278
        // Predicated region
        $region41: #{tpu_custom_call.1} parent=39 // pred_check
          %p280 = pneg %p50
        $region42: #{tpu_custom_call.1} parent=39 // pred_check_branch
          %282 = sbr.rel (%p280) target = $region44
        $region43: #{tpu_custom_call.1} parent=39 // pred_region
          %284 = dma.done %s276, 256
        $region44: #{tpu_custom_call.1} parent=39 // pred_fallthru
          _
        // Predicated region
        $region45: #{tpu_custom_call.1} parent=39 // pred_check
          %p285 = pneg %p71
        $region46: #{tpu_custom_call.1} parent=39 // pred_check_branch
          %287 = sbr.rel (%p285) target = $region48
        $region47: #{tpu_custom_call.1} parent=39 // pred_region
          %289 = dma.done [#allocation6], 16
        $region48: #{tpu_custom_call.1} parent=39 // pred_fallthru
          _
        // Predicated region
        $region49: #{tpu_custom_call.1} parent=39 // pred_check
          %p290 = pneg %p92
        $region50: #{tpu_custom_call.1} parent=39 // pred_check_branch
          %292 = sbr.rel (%p290) target = $region52
        $region51: #{tpu_custom_call.1} parent=39 // pred_region
          %294 = dma.done [#allocation6], 16
        $region52: #{tpu_custom_call.1} parent=39 // pred_fallthru
          _
        // Predicated region
        $region53: #{tpu_custom_call.1} parent=39 // pred_check
          %p295 = pneg %p113
        $region54: #{tpu_custom_call.1} parent=39 // pred_check_branch
          %297 = sbr.rel (%p295) target = $region56
        $region55: #{tpu_custom_call.1} parent=39 // pred_region
          %299 = dma.done [#allocation9], 3072
        $region56: #{tpu_custom_call.1} parent=39 // pred_fallthru
          _
        %s300 = sand.u32 %s37, 1
        %s301 = scalar_lea.sflag [#allocation3], %s300
        %s302 = sand.u32 %s37, 1
        %s303 = smul.addr %s302, 16
        %s304 = scalar_lea.vmem [#allocation2], %s303
        %p305 = pneg %p50
        %p306 = pneg %p47
        %p307 = pneg %p71
        %p308 = pneg %p68
        %p309 = pneg %p92
        %p310 = pneg %p89
        %p311 = pneg %p113
        %p312 = pneg %p110
        %p313 = pneg %p134
        %p314 = pneg %p131
        %p315 = pneg %p160
        %p316 = pneg %p157
        %s317 = sand.u32 %s147, 1
        %s318 = scalar_lea.sflag [#allocation4], %s317
        %s319 = sand.u32 %s147, 1
        %s320 = smul.addr %s319, 8
        %s321 = scalar_lea.vmem [#allocation10], %s320
        %p322 = pneg %p186
        %p323 = pneg %p183
        %s324 = sand.u32 %s173, 1
        %s325 = scalar_lea.sflag [#allocation12], %s324
        %s326 = sand.u32 %s173, 1
        %s327 = smul.addr %s326, 24
        %s328 = scalar_lea.vmem [#allocation11], %s327
        %s329 = smul.u32 2, %s29
        %s330 = smul.u32 2, %s29
        %s331 = smul.u32 2, %s29
        %v332 = vld [vmem:[%s279] sm:$0xff]
        %v333 = vld [vmem:[%s279 + $0x8] sm:$0xff]
        %334 = vadd.xlane.f32.xlu0 %v332
        %v335 = vpop.xlane.xlu0 %334
        %336 = vadd.xlane.f32.xlu0 %v333
        %v337 = vpop.xlane.xlu0 %336
        %v338 = vrcp.pop 128.0
        %v339 = vmul.f32 128.0, %v338
        %v340 = vsub.f32 1.0, %v339
        %v341 = vmul.f32 %v338, %v340
        %v342 = vadd.f32 %v338, %v341
        %vm343 = vweird.f32 %v338
        %v344 = vsel %vm343, %v338, %v342
        %v345 = vmul.f32 %v335, %v344
        %v346 = vmul.f32 %v337, %v344
        %v347 = vsub.f32 %v332, %v345
        %v348 = vsub.f32 %v333, %v346
        %v349 = vmul.f32 %v347, %v347
        %v350 = vmul.f32 %v348, %v348
        %351 = vadd.xlane.f32.xlu0 %v349
        %v352 = vpop.xlane.xlu0 %351
        %353 = vadd.xlane.f32.xlu0 %v350
        %v354 = vpop.xlane.xlu0 %353
        %v355 = vmul.f32 %v352, %v344
        %v356 = vmul.f32 %v354, %v344
        %v357 = vadd.f32 %v355, 1e-05
        %v358 = vadd.f32 %v356, 1e-05
        %v359 = vrsqrt.pop %v357
        %v360 = vmul.f32 %v359, %v357
        %v361 = vmul.f32 %v360, %v359
        %v362 = vmul.f32 0.5, %v361
        %v363 = vsub.f32 1.5, %v362
        %v364 = vmul.f32 %v359, %v363
        %vm365 = vweird.f32 %v357
        %vm366 = vweird.f32 %v359
        %vm367 = vmor %vm365, %vm366
        %v368 = vsel %vm367, %v359, %v364
        %v369 = vrsqrt.pop %v358
        %v370 = vmul.f32 %v369, %v358
        %v371 = vmul.f32 %v370, %v369
        %v372 = vmul.f32 0.5, %v371
        %v373 = vsub.f32 1.5, %v372
        %v374 = vmul.f32 %v369, %v373
        %vm375 = vweird.f32 %v358
        %vm376 = vweird.f32 %v369
        %vm377 = vmor %vm375, %vm376
        %v378 = vsel %vm377, %v369, %v374
        %v379 = vmul.f32 %v347, %v368
        %v380 = vmul.f32 %v348, %v378
        %v381 = vld [vmem:[#allocation5] sm:$0x1]
        %v383 = vperm.slane %v381, 0
        %v385 = vmul.f32 %v379, %v383
        %v386 = vmul.f32 %v380, %v383
        %v387 = vld [vmem:[#allocation7] sm:$0x1]
        %v389 = vperm.slane %v387, 0
        %v391 = vadd.f32 %v385, %v389
        %v392 = vadd.f32 %v386, %v389
        %v393 = vpack.c.bf16 %v391, %v391
        %v394 = vpack.c.bf16 %v392, %v392
        %395 = vst [vmem:[%s321] sm:$0xf] %v393
        %396 = vst [vmem:[%s321 + $0x4] sm:$0xf] %v394
        %v397 = vld [vmem:[#allocation8] sm:$0xff]
        %v398 = vld [vmem:[#allocation8 + $0x8] sm:$0xf]
        %v399 = vld [vmem:[#allocation8 + $0xc] sm:$0xff]
        %v400 = vld [vmem:[#allocation8 + $0x14] sm:$0xf]
        %v401 = vld [vmem:[#allocation8 + $0x18] sm:$0xff]
        %v402 = vld [vmem:[#allocation8 + $0x20] sm:$0xf]
        %v403 = vld [vmem:[#allocation8 + $0x24] sm:$0xff]
        %v404 = vld [vmem:[#allocation8 + $0x2c] sm:$0xf]
        %v405 = vld [vmem:[#allocation8 + $0x30] sm:$0xff]
        %v406 = vld [vmem:[#allocation8 + $0x38] sm:$0xf]
        %v407 = vld [vmem:[#allocation8 + $0x3c] sm:$0xff]
        %v408 = vld [vmem:[#allocation8 + $0x44] sm:$0xf]
        %v409 = vld [vmem:[#allocation8 + $0x48] sm:$0xff]
        %v410 = vld [vmem:[#allocation8 + $0x50] sm:$0xf]
        %v411 = vld [vmem:[#allocation8 + $0x54] sm:$0xff]
        %v412 = vld [vmem:[#allocation8 + $0x5c] sm:$0xf]
        %v413 = vld [vmem:[#allocation8 + $0x60] sm:$0xff]
        %v414 = vld [vmem:[#allocation8 + $0x68] sm:$0xf]
        %v415 = vld [vmem:[#allocation8 + $0x6c] sm:$0xff]
        %v416 = vld [vmem:[#allocation8 + $0x74] sm:$0xf]
        %v417 = vld [vmem:[#allocation8 + $0x78] sm:$0xff]
        %v418 = vld [vmem:[#allocation8 + $0x80] sm:$0xf]
        %v419 = vld [vmem:[#allocation8 + $0x84] sm:$0xff]
        %v420 = vld [vmem:[#allocation8 + $0x8c] sm:$0xf]
        %v421 = vld [vmem:[#allocation8 + $0x90] sm:$0xff]
        %v422 = vld [vmem:[#allocation8 + $0x98] sm:$0xf]
        %v423 = vld [vmem:[#allocation8 + $0x9c] sm:$0xff]
        %v424 = vld [vmem:[#allocation8 + $0xa4] sm:$0xf]
        %v425 = vld [vmem:[#allocation8 + $0xa8] sm:$0xff]
        %v426 = vld [vmem:[#allocation8 + $0xb0] sm:$0xf]
        %v427 = vld [vmem:[#allocation8 + $0xb4] sm:$0xff]
        %v428 = vld [vmem:[#allocation8 + $0xbc] sm:$0xf]
        %v429 = vld [vmem:[%s4] sm:$0x7]
        %v431 = vperm.slane %v429, 0
        %v432 = vperm.slane %v429, 1
        %v433 = vperm.slane %v429, 2
        %v439 = vunpack.c.l.b16 %v393
        %v440 = vunpack.c.l.b16 %v394
        %v441 = vpack.c.b16 %v440, %v439
        %v475 = vunpack.c.l.b16 %v397
        %v476 = vunpack.c.h.b16 %v397
        %v477 = vunpack.c.l.b16 %v398
        %v478 = vunpack.c.l.b16 %v399
        %v479 = vunpack.c.h.b16 %v399
        %v480 = vunpack.c.l.b16 %v400
        %v481 = vunpack.c.l.b16 %v401
        %v482 = vunpack.c.h.b16 %v401
        %v483 = vunpack.c.l.b16 %v402
        %v484 = vunpack.c.l.b16 %v403
        %v485 = vunpack.c.h.b16 %v403
        %v486 = vunpack.c.l.b16 %v404
        %v487 = vunpack.c.l.b16 %v405
        %v488 = vunpack.c.h.b16 %v405
        %v489 = vunpack.c.l.b16 %v406
        %v490 = vunpack.c.l.b16 %v407
        %v491 = vunpack.c.h.b16 %v407
        %v492 = vunpack.c.l.b16 %v408
        %v493 = vunpack.c.l.b16 %v409
        %v494 = vunpack.c.h.b16 %v409
        %v495 = vunpack.c.l.b16 %v410
        %v496 = vunpack.c.l.b16 %v411
        %v497 = vunpack.c.h.b16 %v411
        %v498 = vunpack.c.l.b16 %v412
        %v499 = vunpack.c.l.b16 %v413
        %v500 = vunpack.c.h.b16 %v413
        %v501 = vunpack.c.l.b16 %v414
        %v502 = vunpack.c.l.b16 %v415
        %v503 = vunpack.c.h.b16 %v415
        %v504 = vunpack.c.l.b16 %v416
        %v505 = vunpack.c.l.b16 %v417
        %v506 = vunpack.c.h.b16 %v417
        %v507 = vunpack.c.l.b16 %v418
        %v508 = vunpack.c.l.b16 %v419
        %v509 = vunpack.c.h.b16 %v419
        %v510 = vunpack.c.l.b16 %v420
        %v511 = vunpack.c.l.b16 %v421
        %v512 = vunpack.c.h.b16 %v421
        %v513 = vunpack.c.l.b16 %v422
        %v514 = vunpack.c.l.b16 %v423
        %v515 = vunpack.c.h.b16 %v423
        %v516 = vunpack.c.l.b16 %v424
        %v517 = vunpack.c.l.b16 %v425
        %v518 = vunpack.c.h.b16 %v425
        %v519 = vunpack.c.l.b16 %v426
        %v520 = vunpack.c.l.b16 %v427
        %v521 = vunpack.c.h.b16 %v427
        %v522 = vunpack.c.l.b16 %v428
        %v523 = vpack.c.b16 %v478, %v475
        %v524 = vpack.c.b16 %v479, %v476
        %v525 = vpack.c.b16 %v480, %v477
        %v526 = vpack.c.b16 %v484, %v481
        %v527 = vpack.c.b16 %v485, %v482
        %v528 = vpack.c.b16 %v486, %v483
        %v529 = vpack.c.b16 %v490, %v487
        %v530 = vpack.c.b16 %v491, %v488
        %v531 = vpack.c.b16 %v492, %v489
        %v532 = vpack.c.b16 %v496, %v493
        %v533 = vpack.c.b16 %v497, %v494
        %v534 = vpack.c.b16 %v498, %v495
        %v535 = vpack.c.b16 %v502, %v499
        %v536 = vpack.c.b16 %v503, %v500
        %v537 = vpack.c.b16 %v504, %v501
        %v538 = vpack.c.b16 %v508, %v505
        %v539 = vpack.c.b16 %v509, %v506
        %v540 = vpack.c.b16 %v510, %v507
        %v541 = vpack.c.b16 %v514, %v511
        %v542 = vpack.c.b16 %v515, %v512
        %v543 = vpack.c.b16 %v516, %v513
        %v544 = vpack.c.b16 %v520, %v517
        %v545 = vpack.c.b16 %v521, %v518
        %v546 = vpack.c.b16 %v522, %v519
        %571 = vmatpush.bf16.msra.mxu0 %v544
        %572 = vmatpush.bf16.msra.mxu0 %v541
        %573 = vmatpush.bf16.msra.mxu0 %v538
        %574 = vmatpush.bf16.msra.mxu0 %v535
        %575 = vmatpush.bf16.msra.mxu0 %v532
        %576 = vmatpush.bf16.msra.mxu0 %v529
        %577 = vmatpush.bf16.msra.mxu0 %v526
        %578 = vmatpush.bf16.msra.mxu0 %v523
        %579 = vmatmul.bf16.gmra.mxu0 %v441
        %v580 = vpop.f32.mrf.mxu0
        %v581 = vadd.f32 %v431, %v580
        %v582 = vpop.f32.mrf.mxu0
        %v583 = vadd.f32 %v431, %v582
        %584 = vdwg.mxu0
        %585 = vmatpush.bf16.msra.mxu0 %v545
        %586 = vmatpush.bf16.msra.mxu0 %v542
        %587 = vmatpush.bf16.msra.mxu0 %v539
        %588 = vmatpush.bf16.msra.mxu0 %v536
        %589 = vmatpush.bf16.msra.mxu0 %v533
        %590 = vmatpush.bf16.msra.mxu0 %v530
        %591 = vmatpush.bf16.msra.mxu0 %v527
        %592 = vmatpush.bf16.msra.mxu0 %v524
        %593 = vmatmul.bf16.gmra.mxu0 %v441
        %v594 = vpop.f32.mrf.mxu0
        %v595 = vadd.f32 %v432, %v594
        %v596 = vpop.f32.mrf.mxu0
        %v597 = vadd.f32 %v432, %v596
        %598 = vdwg.mxu0
        %599 = vmatpush.bf16.msra.mxu0 %v546
        %600 = vmatpush.bf16.msra.mxu0 %v543
        %601 = vmatpush.bf16.msra.mxu0 %v540
        %602 = vmatpush.bf16.msra.mxu0 %v537
        %603 = vmatpush.bf16.msra.mxu0 %v534
        %604 = vmatpush.bf16.msra.mxu0 %v531
        %605 = vmatpush.bf16.msra.mxu0 %v528
        %606 = vmatpush.bf16.msra.mxu0 %v525
        %607 = vmatmul.bf16.gmra.mxu0 %v441
        %v608 = vpop.f32.mrf.mxu0
        %v609 = vadd.f32 %v433, %v608
        %v610 = vpop.f32.mrf.mxu0
        %v611 = vadd.f32 %v433, %v610
        %612 = vdwg.mxu0
        %v613 = vpack.c.bf16 %v595, %v581
        %v614 = vpack.c.bf16 %v609, %v609
        %v615 = vpack.c.bf16 %v597, %v583
        %v616 = vpack.c.bf16 %v611, %v611
        %617 = vst [vmem:[%s328] sm:$0xff] %v613
        %618 = vst [vmem:[%s328 + $0x8] sm:$0xf] %v614
        %619 = vst [vmem:[%s328 + $0xc] sm:$0xff] %v615
        %620 = vst [vmem:[%s328 + $0x14] sm:$0xf] %v616
        %s621 = sand.u32 %s147, 1
        %s622 = scalar_lea.sflag [#allocation4], %s621
        %s623 = sand.u32 %s147, 1
        %s624 = smul.addr %s623, 8
        %s625 = scalar_lea.vmem [#allocation10], %s624
        %s626 = sand.u32 %s173, 1
        %s627 = scalar_lea.sflag [#allocation12], %s626
        %s628 = sand.u32 %s173, 1
        %s629 = smul.addr %s628, 24
        %s630 = scalar_lea.vmem [#allocation11], %s629
        // Predicated region
        $region57: #{tpu_custom_call.1} parent=39 // pred_check
          %p631 = pneg %p157
        $region58: #{tpu_custom_call.1} parent=39 // pred_check_branch
          %633 = sbr.rel (%p631) target = $region60
        $region59: #{tpu_custom_call.1} parent=39 // pred_region
          %s634 = smul.u32 2, %s29
          %636 = vsyncadd %s622, 0
          %s637 = smul.addr %s634, 4
          %s638 = scalar_lea.hbm %s5, %s637
          %s639 = sshll.u32 %s625, 4
          %s640 = int_to_ptr.vmem [resolvable:$true] %s639
          %s641 = sshll.u32 %s638, 4
          %s642 = int_to_ptr.hbm [resolvable:$true] %s641
          %647 = dma.vmem_to_hbm [thread:$0]  %s640, 128, %s642, %s622, 64, 64, 4
        $region60: #{tpu_custom_call.1} parent=39 // pred_fallthru
          _
        // Predicated region
        $region61: #{tpu_custom_call.1} parent=39 // pred_check
          %p648 = pneg %p183
        $region62: #{tpu_custom_call.1} parent=39 // pred_check_branch
          %650 = sbr.rel (%p648) target = $region64
        $region63: #{tpu_custom_call.1} parent=39 // pred_region
          %s651 = smul.u32 2, %s29
          %653 = vsyncadd %s627, 0
          %s654 = smul.addr %s651, 3
          %s655 = smul.addr %s654, 4
          %s656 = scalar_lea.hbm %s6, %s655
          %s657 = sshll.u32 %s630, 4
          %s658 = int_to_ptr.vmem [resolvable:$true] %s657
          %s659 = sshll.u32 %s656, 4
          %s660 = int_to_ptr.hbm [resolvable:$true] %s659
          %665 = dma.vmem_to_hbm [thread:$0]  %s658, 384, %s660, %s627, 192, 192, 12
        $region64: #{tpu_custom_call.1} parent=39 // pred_fallthru
          _
      $region40: #{tpu_custom_call.1} parent=5 // pred_fallthru
        _
      %p666 = scmp.le.s32.totalorder 2, %s24
      // Predicated region
      $region65: #{tpu_custom_call.1} parent=5 // pred_check
        %p667 = pneg %p666
      $region66: #{tpu_custom_call.1} parent=5 // pred_check_branch
        %669 = sbr.rel (%p667) target = $region68
      $region67: #{tpu_custom_call.1} parent=5 // pred_region
        %s670 = ssub.s32 %s24, 2
        // Predicated region
        $region69: #{tpu_custom_call.1} parent=67 // pred_check
          %p671 = pneg %p163
        $region70: #{tpu_custom_call.1} parent=67 // pred_check_branch
          %673 = sbr.rel (%p671) target = $region72
        $region71: #{tpu_custom_call.1} parent=67 // pred_region
          %s674 = sand.u32 %s148, 1
          %s675 = scalar_lea.sflag [#allocation4], %s674
          %s676 = sand.u32 %s148, 1
          %s677 = smul.addr %s676, 8
          %s678 = scalar_lea.vmem [#allocation10], %s677
          %680 = dma.done %s675, 128
        $region72: #{tpu_custom_call.1} parent=67 // pred_fallthru
          _
        // Predicated region
        $region73: #{tpu_custom_call.1} parent=67 // pred_check
          %p681 = pneg %p189
        $region74: #{tpu_custom_call.1} parent=67 // pred_check_branch
          %683 = sbr.rel (%p681) target = $region76
        $region75: #{tpu_custom_call.1} parent=67 // pred_region
          %s684 = sand.u32 %s174, 1
          %s685 = scalar_lea.sflag [#allocation12], %s684
          %s686 = sand.u32 %s174, 1
          %s687 = smul.addr %s686, 24
          %s688 = scalar_lea.vmem [#allocation11], %s687
          %690 = dma.done %s685, 384
        $region76: #{tpu_custom_call.1} parent=67 // pred_fallthru
          _
      $region68: #{tpu_custom_call.1} parent=5 // pred_fallthru
        _
    $region6: #{tpu_custom_call.1} parent=1 // loop_footer
      %s28 = sadd.s32 1, %s24
    $region7: #{tpu_custom_call.1} parent=1 // loop_footer_branch
      %23 = sbr.rel target = $region3
    $region8: #{tpu_custom_call.1} parent=1 // loop_exit
      _
    %691 = vsyncpa [#allocation3], 1
    %s692 = scalar_lea.sflag [#allocation3], 1
    %693 = vsyncpa %s692, 1
    %694 = vsyncpa [#allocation6], 1
    %695 = vsyncpa [#allocation9], 1
    %696 = vsyncpa [#allocation4], 1
    %s697 = scalar_lea.sflag [#allocation4], 1
    %698 = vsyncpa %s697, 1
    %699 = vsyncpa [#allocation12], 1
    %s700 = scalar_lea.sflag [#allocation12], 1
    %701 = vsyncpa %s700, 1

// kernel: tpu_custom_call.1
$region0: #{tpu_custom_call.1}
  #allocation0 [shape = 'u32[]', space=smem, size = 0x4, offset = 0x4, fixed_abs, tag = 'smem constant byte address 0x4 - core index']
  #allocation1 [shape = 'u32[72,128]{1,0:T(1,128)}', space=vmem, size = 0x9000, scoped, tag = 'internal scratch']
  %s0 = inlined_call_operand.hbm [shape: f32[32,128], index: 0, kind: input, shape index: {}]
  %s1 = inlined_call_operand.hbm [shape: f32[1,128], index: 1, kind: input, shape index: {}]
  %s2 = inlined_call_operand.hbm [shape: f32[1,128], index: 2, kind: input, shape index: {}]
  %s3 = inlined_call_operand.hbm [shape: bf16[128,384], index: 3, kind: input, shape index: {}]
  %s4 = inlined_call_operand.vmem [shape: f32[1,384], index: 4, kind: input, shape index: {}]
  %s5 = inlined_call_operand.hbm [shape: bf16[32,128], index: 5, kind: output, shape index: {0}]
  %s6 = inlined_call_operand.hbm [shape: bf16[32,384], index: 6, kind: output, shape index: {1}]
  %7 = xla_tuple %s5, %s6
  %s8 = sld [smem:[#allocation0]]
  $region77: #{tpu_custom_call.1} parent=0
    _
  %s10 = ssub.s32 1, %s8
  %s11 = scalar_select 0, %s10, %s8
  $region1: #{tpu_custom_call.1} parent=0
    #allocation2 [shape = 'u8[16384]{0}', space=vmem, size = 0x4000, scoped, tag = 'input window, operand 0']
    #allocation3 [shape = 's32[2]{0}', space=sflag, size = 0x8, scoped, tag = 'scoped memory for tpu_custom_call.1']
    #allocation4 [shape = 's32[2]{0}', space=sflag, size = 0x8, scoped, tag = 'scoped memory for tpu_custom_call.1']
    #allocation5 [shape = 'u8[512]{0}', space=vmem, size = 0x400, scoped, tag = 'input window, operand 1, single buffered']
    #allocation6 [shape = 's32[1]{0}', space=sflag, size = 0x4, scoped, tag = 'scoped memory for tpu_custom_call.1']
    #allocation7 [shape = 'u8[512]{0}', space=vmem, size = 0x400, scoped, tag = 'input window, operand 2, single buffered']
    #allocation8 [shape = 'u8[98304]{0}', space=vmem, size = 0x18000, scoped, tag = 'input window, operand 3, single buffered']
    #allocation9 [shape = 's32[1]{0}', space=sflag, size = 0x4, scoped, tag = 'scoped memory for tpu_custom_call.1']
    #allocation10 [shape = 'u8[8192]{0}', space=vmem, size = 0x2000, scoped, tag = 'output window, operand 0']
    #allocation11 [shape = 'u8[24576]{0}', space=vmem, size = 0x6000, scoped, tag = 'output window, operand 1']
    #allocation12 [shape = 's32[2]{0}', space=sflag, size = 0x8, scoped, tag = 'scoped memory for tpu_custom_call.1']
    %12 = vsyncpa [#allocation3], 0
    %s13 = scalar_lea.sflag [#allocation3], 1
    %14 = vsyncpa %s13, 0
    %15 = vsyncpa [#allocation6], 0
    %16 = vsyncpa [#allocation9], 0
    %17 = vsyncpa [#allocation4], 0
    %s18 = scalar_lea.sflag [#allocation4], 1
    %19 = vsyncpa %s18, 0
    %20 = vsyncpa [#allocation12], 0
    %s21 = scalar_lea.sflag [#allocation12], 1
    %22 = vsyncpa %s21, 0
    loop: start=0, step=1, limit=4
    $region2: #{tpu_custom_call.1} parent=1 // loop_pre_header
      _
    $region3: #{tpu_custom_call.1} parent=1 // loop_header
      %s24 = sphi 0, %s28
      %p25 = scmp.ge.s32.totalorder %s24, 4
      %s34 = sphi 0, %s36
      %s37 = sphi 0, %s34
      %s38 = sphi 0, %s37
      %s54 = sphi 0, %s38
      %s58 = sphi 0, %s58
      %s60 = sphi 0, %s58
      %s61 = sphi 0, %s60
      %s75 = sphi 0, %s61
      %s79 = sphi 0, %s79
      %s81 = sphi 0, %s79
      %s82 = sphi 0, %s81
      %s96 = sphi 0, %s82
      %s100 = sphi 0, %s100
      %s102 = sphi 0, %s100
      %s103 = sphi 0, %s102
      %s117 = sphi 0, %s103
      %s121 = sphi 0, %s121
      %s123 = sphi 0, %s121
      %s124 = sphi 0, %s123
      %s138 = sphi 0, %s124
      %s144 = sphi 0, %s146
      %s147 = sphi 0, %s144
      %s148 = sphi 0, %s147
      %s164 = sphi 0, %s148
      %s170 = sphi 0, %s172
      %s173 = sphi 0, %s170
      %s174 = sphi 0, %s173
      %s190 = sphi 0, %s174
    $region4: #{tpu_custom_call.1} parent=1 // loop_header_branch
      %27 = sbr.rel (%p25) target = $region8
    $region5: #{tpu_custom_call.1} parent=1 // loop_body
      %s29 = ssub.s32 %s24, 1
      %s30 = ssub.s32 %s24, 2
      %s31 = sadd.s32 %s24, 1
      %s32 = ssub.s32 %s24, %s31
      %p33 = scmp.eq.s32.totalorder %s32, 0
      %s35 = sadd.s32 %s34, 1
      %s36 = scalar_select %p33, %s34, %s35
      %p39 = pneg %p33
      %p40 = scmp.eq.s32.totalorder %s24, 1
      %p41 = por %p39, %p40
      %p42 = scmp.ne.s32.totalorder %s34, %s37
      %p43 = scmp.eq.s32.totalorder %s24, 0
      %p44 = por %p42, %p43
      %p45 = scmp.ne.s32.totalorder %s34, %s37
      %p46 = scmp.eq.s32.totalorder %s29, 1
      %p47 = por %p45, %p46
      %p48 = scmp.ne.s32.totalorder %s37, %s38
      %p49 = scmp.eq.s32.totalorder %s29, 0
      %p50 = por %p48, %p49
      %p51 = scmp.ne.s32.totalorder %s37, %s38
      %p52 = scmp.eq.s32.totalorder %s30, 1
      %p53 = por %p51, %p52
      %p55 = scmp.ne.s32.totalorder %s38, %s54
      %p56 = scmp.eq.s32.totalorder %s30, 0
      %p57 = por %p55, %p56
      %s59 = sadd.s32 %s58, 1
      %p62 = scmp.eq.s32.totalorder %s24, 1
      %p63 = scmp.ne.s32.totalorder %s58, %s60
      %p64 = scmp.eq.s32.totalorder %s24, 0
      %p65 = por %p63, %p64
      %p66 = scmp.ne.s32.totalorder %s58, %s60
      %p67 = scmp.eq.s32.totalorder %s29, 1
      %p68 = por %p66, %p67
      %p69 = scmp.ne.s32.totalorder %s60, %s61
      %p70 = scmp.eq.s32.totalorder %s29, 0
      %p71 = por %p69, %p70
      %p72 = scmp.ne.s32.totalorder %s60, %s61
      %p73 = scmp.eq.s32.totalorder %s30, 1
      %p74 = por %p72, %p73
      %p76 = scmp.ne.s32.totalorder %s61, %s75
      %p77 = scmp.eq.s32.totalorder %s30, 0
      %p78 = por %p76, %p77
      %s80 = sadd.s32 %s79, 1
      %p83 = scmp.eq.s32.totalorder %s24, 1
      %p84 = scmp.ne.s32.totalorder %s79, %s81
      %p85 = scmp.eq.s32.totalorder %s24, 0
      %p86 = por %p84, %p85
      %p87 = scmp.ne.s32.totalorder %s79, %s81
      %p88 = scmp.eq.s32.totalorder %s29, 1
      %p89 = por %p87, %p88
      %p90 = scmp.ne.s32.totalorder %s81, %s82
      %p91 = scmp.eq.s32.totalorder %s29, 0
      %p92 = por %p90, %p91
      %p93 = scmp.ne.s32.totalorder %s81, %s82
      %p94 = scmp.eq.s32.totalorder %s30, 1
      %p95 = por %p93, %p94
      %p97 = scmp.ne.s32.totalorder %s82, %s96
      %p98 = scmp.eq.s32.totalorder %s30, 0
      %p99 = por %p97, %p98
      %s101 = sadd.s32 %s100, 1
      %p104 = scmp.eq.s32.totalorder %s24, 1
      %p105 = scmp.ne.s32.totalorder %s100, %s102
      %p106 = scmp.eq.s32.totalorder %s24, 0
      %p107 = por %p105, %p106
      %p108 = scmp.ne.s32.totalorder %s100, %s102
      %p109 = scmp.eq.s32.totalorder %s29, 1
      %p110 = por %p108, %p109
      %p111 = scmp.ne.s32.totalorder %s102, %s103
      %p112 = scmp.eq.s32.totalorder %s29, 0
      %p113 = por %p111, %p112
      %p114 = scmp.ne.s32.totalorder %s102, %s103
      %p115 = scmp.eq.s32.totalorder %s30, 1
      %p116 = por %p114, %p115
      %p118 = scmp.ne.s32.totalorder %s103, %s117
      %p119 = scmp.eq.s32.totalorder %s30, 0
      %p120 = por %p118, %p119
      %s122 = sadd.s32 %s121, 1
      %p125 = scmp.eq.s32.totalorder %s24, 1
      %p126 = scmp.ne.s32.totalorder %s121, %s123
      %p127 = scmp.eq.s32.totalorder %s24, 0
      %p128 = por %p126, %p127
      %p129 = scmp.ne.s32.totalorder %s121, %s123
      %p130 = scmp.eq.s32.totalorder %s29, 1
      %p131 = por %p129, %p130
      %p132 = scmp.ne.s32.totalorder %s123, %s124
      %p133 = scmp.eq.s32.totalorder %s29, 0
      %p134 = por %p132, %p133
      %p135 = scmp.ne.s32.totalorder %s123, %s124
      %p136 = scmp.eq.s32.totalorder %s30, 1
      %p137 = por %p135, %p136
      %p139 = scmp.ne.s32.totalorder %s124, %s138
      %p140 = scmp.eq.s32.totalorder %s30, 0
      %p141 = por %p139, %p140
      %s142 = ssub.s32 %s24, %s31
      %p143 = scmp.eq.s32.totalorder %s142, 0
      %s145 = sadd.s32 %s144, 1
      %s146 = scalar_select %p143, %s144, %s145
      %p149 = pneg %p143
      %p150 = scmp.eq.s32.totalorder %s24, 1
      %p151 = por %p149, %p150
      %p152 = scmp.ne.s32.totalorder %s144, %s147
      %p153 = scmp.eq.s32.totalorder %s24, 0
      %p154 = por %p152, %p153
      %p155 = scmp.ne.s32.totalorder %s144, %s147
      %p156 = scmp.eq.s32.totalorder %s29, 1
      %p157 = por %p155, %p156
      %p158 = scmp.ne.s32.totalorder %s147, %s148
      %p159 = scmp.eq.s32.totalorder %s29, 0
      %p160 = por %p158, %p159
      %p161 = scmp.ne.s32.totalorder %s147, %s148
      %p162 = scmp.eq.s32.totalorder %s30, 1
      %p163 = por %p161, %p162
      %p165 = scmp.ne.s32.totalorder %s148, %s164
      %p166 = scmp.eq.s32.totalorder %s30, 0
      %p167 = por %p165, %p166
      %s168 = ssub.s32 %s24, %s31
      %p169 = scmp.eq.s32.totalorder %s168, 0
      %s171 = sadd.s32 %s170, 1
      %s172 = scalar_select %p169, %s170, %s171
      %p175 = pneg %p169
      %p176 = scmp.eq.s32.totalorder %s24, 1
      %p177 = por %p175, %p176
      %p178 = scmp.ne.s32.totalorder %s170, %s173
      %p179 = scmp.eq.s32.totalorder %s24, 0
      %p180 = por %p178, %p179
      %p181 = scmp.ne.s32.totalorder %s170, %s173
      %p182 = scmp.eq.s32.totalorder %s29, 1
      %p183 = por %p181, %p182
      %p184 = scmp.ne.s32.totalorder %s173, %s174
      %p185 = scmp.eq.s32.totalorder %s29, 0
      %p186 = por %p184, %p185
      %p187 = scmp.ne.s32.totalorder %s173, %s174
      %p188 = scmp.eq.s32.totalorder %s30, 1
      %p189 = por %p187, %p188
      %p191 = scmp.ne.s32.totalorder %s174, %s190
      %p192 = scmp.eq.s32.totalorder %s30, 0
      %p193 = por %p191, %p192
      %p194 = scmp.le.s32.totalorder 1, %s24
      %p195 = scmp.lt.s32.totalorder %s24, 3
      %p196 = pnand %p194, %p195
      %p197 = pneg %p196
      // Predicated region
      $region9: #{tpu_custom_call.1} parent=5 // pred_check
        _
      $region10: #{tpu_custom_call.1} parent=5 // pred_check_branch
        %199 = sbr.rel (%p196) target = $region12
      $region11: #{tpu_custom_call.1} parent=5 // pred_region
        %s200 = ssub.s32 %s24, 1
        // Predicated region
        $region13: #{tpu_custom_call.1} parent=11 // pred_check
          %p201 = pneg %p71
        $region14: #{tpu_custom_call.1} parent=11 // pred_check_branch
          %203 = sbr.rel (%p201) target = $region16
        $region15: #{tpu_custom_call.1} parent=11 // pred_region
          %205 = vsyncadd [#allocation6], 0
          %s207 = sshll.u32 %s1, 4
          %s208 = int_to_ptr.hbm [resolvable:$true] %s207
          %s209 = sshll.u32 [#allocation5], 4
          %s210 = int_to_ptr.vmem [resolvable:$true] %s209
          %212 = dma.hbm_to_vmem [thread:$0]  %s208, 16, %s210, [#allocation6]
        $region16: #{tpu_custom_call.1} parent=11 // pred_fallthru
          _
        // Predicated region
        $region17: #{tpu_custom_call.1} parent=11 // pred_check
          %p213 = pneg %p92
        $region18: #{tpu_custom_call.1} parent=11 // pred_check_branch
          %215 = sbr.rel (%p213) target = $region20
        $region19: #{tpu_custom_call.1} parent=11 // pred_region
          %217 = vsyncadd [#allocation6], 0
          %s219 = sshll.u32 %s2, 4
          %s220 = int_to_ptr.hbm [resolvable:$true] %s219
          %s221 = sshll.u32 [#allocation7], 4
          %s222 = int_to_ptr.vmem [resolvable:$true] %s221
          %224 = dma.hbm_to_vmem [thread:$0]  %s220, 16, %s222, [#allocation6]
        $region20: #{tpu_custom_call.1} parent=11 // pred_fallthru
          _
        // Predicated region
        $region21: #{tpu_custom_call.1} parent=11 // pred_check
          %p225 = pneg %p113
        $region22: #{tpu_custom_call.1} parent=11 // pred_check_branch
          %227 = sbr.rel (%p225) target = $region24
        $region23: #{tpu_custom_call.1} parent=11 // pred_region
          %229 = vsyncadd [#allocation9], 0
          %s230 = sshll.u32 %s3, 4
          %s231 = int_to_ptr.hbm [resolvable:$true] %s230
          %s232 = sshll.u32 [#allocation8], 4
          %s233 = int_to_ptr.vmem [resolvable:$true] %s232
          %238 = dma.hbm_to_vmem [thread:$0]  %s231, 3072, %s233, [#allocation9], 192, 192, 12
        $region24: #{tpu_custom_call.1} parent=11 // pred_fallthru
          _
        // Predicated region
        $region25: #{tpu_custom_call.1} parent=11 // pred_check
          %p239 = pneg %p134
        $region26: #{tpu_custom_call.1} parent=11 // pred_check_branch
          %241 = sbr.rel (%p239) target = $region28
        $region27: #{tpu_custom_call.1} parent=11 // pred_region
          _
        $region28: #{tpu_custom_call.1} parent=11 // pred_fallthru
          _
      $region12: #{tpu_custom_call.1} parent=5 // pred_fallthru
        _
      %p242 = scmp.lt.s32.totalorder %s24, 2
      // Predicated region
      $region29: #{tpu_custom_call.1} parent=5 // pred_check
        %p243 = pneg %p242
      $region30: #{tpu_custom_call.1} parent=5 // pred_check_branch
        %245 = sbr.rel (%p243) target = $region32
      $region31: #{tpu_custom_call.1} parent=5 // pred_region
        // Predicated region
        $region33: #{tpu_custom_call.1} parent=31 // pred_check
          %p246 = pneg %p44
        $region34: #{tpu_custom_call.1} parent=31 // pred_check_branch
          %248 = sbr.rel (%p246) target = $region36
        $region35: #{tpu_custom_call.1} parent=31 // pred_region
          %s249 = sand.u32 %s34, 1
          %s250 = scalar_lea.sflag [#allocation3], %s249
          %s251 = sand.u32 %s34, 1
          %s252 = smul.addr %s251, 16
          %s253 = scalar_lea.vmem [#allocation2], %s252
          %s254 = smul.u32 2, %s24
          %256 = vsyncadd %s250, 0
          %s257 = smul.addr %s254, 8
          %s258 = scalar_lea.hbm %s0, %s257
          %s259 = sshll.u32 %s258, 4
          %s260 = int_to_ptr.hbm [resolvable:$true] %s259
          %s261 = sshll.u32 %s253, 4
          %s262 = int_to_ptr.vmem [resolvable:$true] %s261
          %267 = dma.hbm_to_vmem [thread:$0]  %s260, 256, %s262, %s250, 128, 128, 8
        $region36: #{tpu_custom_call.1} parent=31 // pred_fallthru
          _
      $region32: #{tpu_custom_call.1} parent=5 // pred_fallthru
        _
      %p268 = scmp.le.s32.totalorder 1, %s24
      %p269 = scmp.lt.s32.totalorder %s24, 3
      %p270 = pnand %p268, %p269
      %p271 = pneg %p270
      // Predicated region
      $region37: #{tpu_custom_call.1} parent=5 // pred_check
        _
      $region38: #{tpu_custom_call.1} parent=5 // pred_check_branch
        %273 = sbr.rel (%p270) target = $region40
      $region39: #{tpu_custom_call.1} parent=5 // pred_region
        %s274 = ssub.s32 %s24, 1
        %s275 = sand.u32 %s37, 1
        %s276 = scalar_lea.sflag [#allocation3], %s275
        %s277 = sand.u32 %s37, 1
        %s278 = smul.addr %s277, 16
        %s279 = scalar_lea.vmem [#allocation2], %s278
        // Predicated region
        $region41: #{tpu_custom_call.1} parent=39 // pred_check
          %p280 = pneg %p50
        $region42: #{tpu_custom_call.1} parent=39 // pred_check_branch
          %282 = sbr.rel (%p280) target = $region44
        $region43: #{tpu_custom_call.1} parent=39 // pred_region
          %284 = dma.done %s276, 256
        $region44: #{tpu_custom_call.1} parent=39 // pred_fallthru
          _
        // Predicated region
        $region45: #{tpu_custom_call.1} parent=39 // pred_check
          %p285 = pneg %p71
        $region46: #{tpu_custom_call.1} parent=39 // pred_check_branch
          %287 = sbr.rel (%p285) target = $region48
        $region47: #{tpu_custom_call.1} parent=39 // pred_region
          %289 = dma.done [#allocation6], 16
        $region48: #{tpu_custom_call.1} parent=39 // pred_fallthru
          _
        // Predicated region
        $region49: #{tpu_custom_call.1} parent=39 // pred_check
          %p290 = pneg %p92
        $region50: #{tpu_custom_call.1} parent=39 // pred_check_branch
          %292 = sbr.rel (%p290) target = $region52
        $region51: #{tpu_custom_call.1} parent=39 // pred_region
          %294 = dma.done [#allocation6], 16
        $region52: #{tpu_custom_call.1} parent=39 // pred_fallthru
          _
        // Predicated region
        $region53: #{tpu_custom_call.1} parent=39 // pred_check
          %p295 = pneg %p113
        $region54: #{tpu_custom_call.1} parent=39 // pred_check_branch
          %297 = sbr.rel (%p295) target = $region56
        $region55: #{tpu_custom_call.1} parent=39 // pred_region
          %299 = dma.done [#allocation9], 3072
        $region56: #{tpu_custom_call.1} parent=39 // pred_fallthru
          _
        %s300 = sand.u32 %s37, 1
        %s301 = scalar_lea.sflag [#allocation3], %s300
        %s302 = sand.u32 %s37, 1
        %s303 = smul.addr %s302, 16
        %s304 = scalar_lea.vmem [#allocation2], %s303
        %p305 = pneg %p50
        %p306 = pneg %p47
        %p307 = pneg %p71
        %p308 = pneg %p68
        %p309 = pneg %p92
        %p310 = pneg %p89
        %p311 = pneg %p113
        %p312 = pneg %p110
        %p313 = pneg %p134
        %p314 = pneg %p131
        %p315 = pneg %p160
        %p316 = pneg %p157
        %s317 = sand.u32 %s147, 1
        %s318 = scalar_lea.sflag [#allocation4], %s317
        %s319 = sand.u32 %s147, 1
        %s320 = smul.addr %s319, 8
        %s321 = scalar_lea.vmem [#allocation10], %s320
        %p322 = pneg %p186
        %p323 = pneg %p183
        %s324 = sand.u32 %s173, 1
        %s325 = scalar_lea.sflag [#allocation12], %s324
        %s326 = sand.u32 %s173, 1
        %s327 = smul.addr %s326, 24
        %s328 = scalar_lea.vmem [#allocation11], %s327
        %s329 = smul.u32 2, %s29
        %s330 = smul.u32 2, %s29
        %s331 = smul.u32 2, %s29
        %v332 = vld [vmem:[%s279] sm:$0xff]
        %v333 = vld [vmem:[%s279 + $0x8] sm:$0xff]
        %334 = vadd.xlane.f32.xlu0 %v332
        %v335 = vpop.xlane.xlu0 %334
        %336 = vadd.xlane.f32.xlu0 %v333
        %v337 = vpop.xlane.xlu0 %336
        %v338 = vrcp.pop 128.0
        %v339 = vmul.f32 128.0, %v338
        %v340 = vsub.f32 1.0, %v339
        %v341 = vmul.f32 %v338, %v340
        %v342 = vadd.f32 %v338, %v341
        %vm343 = vweird.f32 %v338
        %v344 = vsel %vm343, %v338, %v342
        %v345 = vmul.f32 %v335, %v344
        %v346 = vmul.f32 %v337, %v344
        %v347 = vsub.f32 %v332, %v345
        %v348 = vsub.f32 %v333, %v346
        %v349 = vmul.f32 %v347, %v347
        %v350 = vmul.f32 %v348, %v348
        %351 = vadd.xlane.f32.xlu0 %v349
        %v352 = vpop.xlane.xlu0 %351
        %353 = vadd.xlane.f32.xlu0 %v350
        %v354 = vpop.xlane.xlu0 %353
        %v355 = vmul.f32 %v352, %v344
        %v356 = vmul.f32 %v354, %v344
        %v357 = vadd.f32 %v355, 1e-05
        %v358 = vadd.f32 %v356, 1e-05
        %v359 = vrsqrt.pop %v357
        %v360 = vmul.f32 %v359, %v357
        %v361 = vmul.f32 %v360, %v359
        %v362 = vmul.f32 0.5, %v361
        %v363 = vsub.f32 1.5, %v362
        %v364 = vmul.f32 %v359, %v363
        %vm365 = vweird.f32 %v357
        %vm366 = vweird.f32 %v359
        %vm367 = vmor %vm365, %vm366
        %v368 = vsel %vm367, %v359, %v364
        %v369 = vrsqrt.pop %v358
        %v370 = vmul.f32 %v369, %v358
        %v371 = vmul.f32 %v370, %v369
        %v372 = vmul.f32 0.5, %v371
        %v373 = vsub.f32 1.5, %v372
        %v374 = vmul.f32 %v369, %v373
        %vm375 = vweird.f32 %v358
        %vm376 = vweird.f32 %v369
        %vm377 = vmor %vm375, %vm376
        %v378 = vsel %vm377, %v369, %v374
        %v379 = vmul.f32 %v347, %v368
        %v380 = vmul.f32 %v348, %v378
        %v381 = vld [vmem:[#allocation5] sm:$0x1]
        %v383 = vperm.slane %v381, 0
        %v385 = vmul.f32 %v379, %v383
        %v386 = vmul.f32 %v380, %v383
        %v387 = vld [vmem:[#allocation7] sm:$0x1]
        %v389 = vperm.slane %v387, 0
        %v391 = vadd.f32 %v385, %v389
        %v392 = vadd.f32 %v386, %v389
        %v393 = vpack.c.bf16 %v391, %v391
        %v394 = vpack.c.bf16 %v392, %v392
        %395 = vst [vmem:[%s321] sm:$0xf] %v393
        %396 = vst [vmem:[%s321 + $0x4] sm:$0xf] %v394
        %v397 = vld [vmem:[#allocation8] sm:$0xff]
        %v398 = vld [vmem:[#allocation8 + $0x8] sm:$0xf]
        %v399 = vld [vmem:[#allocation8 + $0xc] sm:$0xff]
        %v400 = vld [vmem:[#allocation8 + $0x14] sm:$0xf]
        %v401 = vld [vmem:[#allocation8 + $0x18] sm:$0xff]
        %v402 = vld [vmem:[#allocation8 + $0x20] sm:$0xf]
        %v403 = vld [vmem:[#allocation8 + $0x24] sm:$0xff]
        %v404 = vld [vmem:[#allocation8 + $0x2c] sm:$0xf]
        %v405 = vld [vmem:[#allocation8 + $0x30] sm:$0xff]
        %v406 = vld [vmem:[#allocation8 + $0x38] sm:$0xf]
        %v407 = vld [vmem:[#allocation8 + $0x3c] sm:$0xff]
        %v408 = vld [vmem:[#allocation8 + $0x44] sm:$0xf]
        %v409 = vld [vmem:[#allocation8 + $0x48] sm:$0xff]
        %v410 = vld [vmem:[#allocation8 + $0x50] sm:$0xf]
        %v411 = vld [vmem:[#allocation8 + $0x54] sm:$0xff]
        %v412 = vld [vmem:[#allocation8 + $0x5c] sm:$0xf]
        %v413 = vld [vmem:[#allocation8 + $0x60] sm:$0xff]
        %v414 = vld [vmem:[#allocation8 + $0x68] sm:$0xf]
        %v415 = vld [vmem:[#allocation8 + $0x6c] sm:$0xff]
        %v416 = vld [vmem:[#allocation8 + $0x74] sm:$0xf]
        %v417 = vld [vmem:[#allocation8 + $0x78] sm:$0xff]
        %v418 = vld [vmem:[#allocation8 + $0x80] sm:$0xf]
        %v419 = vld [vmem:[#allocation8 + $0x84] sm:$0xff]
        %v420 = vld [vmem:[#allocation8 + $0x8c] sm:$0xf]
        %v421 = vld [vmem:[#allocation8 + $0x90] sm:$0xff]
        %v422 = vld [vmem:[#allocation8 + $0x98] sm:$0xf]
        %v423 = vld [vmem:[#allocation8 + $0x9c] sm:$0xff]
        %v424 = vld [vmem:[#allocation8 + $0xa4] sm:$0xf]
        %v425 = vld [vmem:[#allocation8 + $0xa8] sm:$0xff]
        %v426 = vld [vmem:[#allocation8 + $0xb0] sm:$0xf]
        %v427 = vld [vmem:[#allocation8 + $0xb4] sm:$0xff]
        %v428 = vld [vmem:[#allocation8 + $0xbc] sm:$0xf]
        %v429 = vld [vmem:[%s4] sm:$0x7]
        %v431 = vperm.slane %v429, 0
        %v432 = vperm.slane %v429, 1
        %v433 = vperm.slane %v429, 2
        %v439 = vunpack.c.l.b16 %v393
        %v440 = vunpack.c.l.b16 %v394
        %v441 = vpack.c.b16 %v440, %v439
        %v475 = vunpack.c.l.b16 %v397
        %v476 = vunpack.c.h.b16 %v397
        %v477 = vunpack.c.l.b16 %v398
        %v478 = vunpack.c.l.b16 %v399
        %v479 = vunpack.c.h.b16 %v399
        %v480 = vunpack.c.l.b16 %v400
        %v481 = vunpack.c.l.b16 %v401
        %v482 = vunpack.c.h.b16 %v401
        %v483 = vunpack.c.l.b16 %v402
        %v484 = vunpack.c.l.b16 %v403
        %v485 = vunpack.c.h.b16 %v403
        %v486 = vunpack.c.l.b16 %v404
        %v487 = vunpack.c.l.b16 %v405
        %v488 = vunpack.c.h.b16 %v405
        %v489 = vunpack.c.l.b16 %v406
        %v490 = vunpack.c.l.b16 %v407
        %v491 = vunpack.c.h.b16 %v407
        %v492 = vunpack.c.l.b16 %v408
        %v493 = vunpack.c.l.b16 %v409
        %v494 = vunpack.c.h.b16 %v409
        %v495 = vunpack.c.l.b16 %v410
        %v496 = vunpack.c.l.b16 %v411
        %v497 = vunpack.c.h.b16 %v411
        %v498 = vunpack.c.l.b16 %v412
        %v499 = vunpack.c.l.b16 %v413
        %v500 = vunpack.c.h.b16 %v413
        %v501 = vunpack.c.l.b16 %v414
        %v502 = vunpack.c.l.b16 %v415
        %v503 = vunpack.c.h.b16 %v415
        %v504 = vunpack.c.l.b16 %v416
        %v505 = vunpack.c.l.b16 %v417
        %v506 = vunpack.c.h.b16 %v417
        %v507 = vunpack.c.l.b16 %v418
        %v508 = vunpack.c.l.b16 %v419
        %v509 = vunpack.c.h.b16 %v419
        %v510 = vunpack.c.l.b16 %v420
        %v511 = vunpack.c.l.b16 %v421
        %v512 = vunpack.c.h.b16 %v421
        %v513 = vunpack.c.l.b16 %v422
        %v514 = vunpack.c.l.b16 %v423
        %v515 = vunpack.c.h.b16 %v423
        %v516 = vunpack.c.l.b16 %v424
        %v517 = vunpack.c.l.b16 %v425
        %v518 = vunpack.c.h.b16 %v425
        %v519 = vunpack.c.l.b16 %v426
        %v520 = vunpack.c.l.b16 %v427
        %v521 = vunpack.c.h.b16 %v427
        %v522 = vunpack.c.l.b16 %v428
        %v523 = vpack.c.b16 %v478, %v475
        %v524 = vpack.c.b16 %v479, %v476
        %v525 = vpack.c.b16 %v480, %v477
        %v526 = vpack.c.b16 %v484, %v481
        %v527 = vpack.c.b16 %v485, %v482
        %v528 = vpack.c.b16 %v486, %v483
        %v529 = vpack.c.b16 %v490, %v487
        %v530 = vpack.c.b16 %v491, %v488
        %v531 = vpack.c.b16 %v492, %v489
        %v532 = vpack.c.b16 %v496, %v493
        %v533 = vpack.c.b16 %v497, %v494
        %v534 = vpack.c.b16 %v498, %v495
        %v535 = vpack.c.b16 %v502, %v499
        %v536 = vpack.c.b16 %v503, %v500
        %v537 = vpack.c.b16 %v504, %v501
        %v538 = vpack.c.b16 %v508, %v505
        %v539 = vpack.c.b16 %v509, %v506
        %v540 = vpack.c.b16 %v510, %v507
        %v541 = vpack.c.b16 %v514, %v511
        %v542 = vpack.c.b16 %v515, %v512
        %v543 = vpack.c.b16 %v516, %v513
        %v544 = vpack.c.b16 %v520, %v517
        %v545 = vpack.c.b16 %v521, %v518
        %v546 = vpack.c.b16 %v522, %v519
        %571 = vmatpush.bf16.msra.mxu0 %v544
        %572 = vmatpush.bf16.msra.mxu0 %v541
        %573 = vmatpush.bf16.msra.mxu0 %v538
        %574 = vmatpush.bf16.msra.mxu0 %v535
        %575 = vmatpush.bf16.msra.mxu0 %v532
        %576 = vmatpush.bf16.msra.mxu0 %v529
        %577 = vmatpush.bf16.msra.mxu0 %v526
        %578 = vmatpush.bf16.msra.mxu0 %v523
        %579 = vmatmul.bf16.gmra.mxu0 %v441
        %v580 = vpop.f32.mrf.mxu0
        %v581 = vadd.f32 %v431, %v580
        %v582 = vpop.f32.mrf.mxu0
        %v583 = vadd.f32 %v431, %v582
        %584 = vdwg.mxu0
        %585 = vmatpush.bf16.msra.mxu0 %v545
        %586 = vmatpush.bf16.msra.mxu0 %v542
        %587 = vmatpush.bf16.msra.mxu0 %v539
        %588 = vmatpush.bf16.msra.mxu0 %v536
        %589 = vmatpush.bf16.msra.mxu0 %v533
        %590 = vmatpush.bf16.msra.mxu0 %v530
        %591 = vmatpush.bf16.msra.mxu0 %v527
        %592 = vmatpush.bf16.msra.mxu0 %v524
        %593 = vmatmul.bf16.gmra.mxu0 %v441
        %v594 = vpop.f32.mrf.mxu0
        %v595 = vadd.f32 %v432, %v594
        %v596 = vpop.f32.mrf.mxu0
        %v597 = vadd.f32 %v432, %v596
        %598 = vdwg.mxu0
        %599 = vmatpush.bf16.msra.mxu0 %v546
        %600 = vmatpush.bf16.msra.mxu0 %v543
        %601 = vmatpush.bf16.msra.mxu0 %v540
        %602 = vmatpush.bf16.msra.mxu0 %v537
        %603 = vmatpush.bf16.msra.mxu0 %v534
        %604 = vmatpush.bf16.msra.mxu0 %v531
        %605 = vmatpush.bf16.msra.mxu0 %v528
        %606 = vmatpush.bf16.msra.mxu0 %v525
        %607 = vmatmul.bf16.gmra.mxu0 %v441
        %v608 = vpop.f32.mrf.mxu0
        %v609 = vadd.f32 %v433, %v608
        %v610 = vpop.f32.mrf.mxu0
        %v611 = vadd.f32 %v433, %v610
        %612 = vdwg.mxu0
        %v613 = vpack.c.bf16 %v595, %v581
        %v614 = vpack.c.bf16 %v609, %v609
        %v615 = vpack.c.bf16 %v597, %v583
        %v616 = vpack.c.bf16 %v611, %v611
        %617 = vst [vmem:[%s328] sm:$0xff] %v613
        %618 = vst [vmem:[%s328 + $0x8] sm:$0xf] %v614
        %619 = vst [vmem:[%s328 + $0xc] sm:$0xff] %v615
        %620 = vst [vmem:[%s328 + $0x14] sm:$0xf] %v616
        %s621 = sand.u32 %s147, 1
        %s622 = scalar_lea.sflag [#allocation4], %s621
        %s623 = sand.u32 %s147, 1
        %s624 = smul.addr %s623, 8
        %s625 = scalar_lea.vmem [#allocation10], %s624
        %s626 = sand.u32 %s173, 1
        %s627 = scalar_lea.sflag [#allocation12], %s626
        %s628 = sand.u32 %s173, 1
        %s629 = smul.addr %s628, 24
        %s630 = scalar_lea.vmem [#allocation11], %s629
        // Predicated region
        $region57: #{tpu_custom_call.1} parent=39 // pred_check
          %p631 = pneg %p157
        $region58: #{tpu_custom_call.1} parent=39 // pred_check_branch
          %633 = sbr.rel (%p631) target = $region60
        $region59: #{tpu_custom_call.1} parent=39 // pred_region
          %s634 = smul.u32 2, %s29
          %636 = vsyncadd %s622, 0
          %s637 = smul.addr %s634, 4
          %s638 = scalar_lea.hbm %s5, %s637
          %s639 = sshll.u32 %s625, 4
          %s640 = int_to_ptr.vmem [resolvable:$true] %s639
          %s641 = sshll.u32 %s638, 4
          %s642 = int_to_ptr.hbm [resolvable:$true] %s641
          %647 = dma.vmem_to_hbm [thread:$0]  %s640, 128, %s642, %s622, 64, 64, 4
        $region60: #{tpu_custom_call.1} parent=39 // pred_fallthru
          _
        // Predicated region
        $region61: #{tpu_custom_call.1} parent=39 // pred_check
          %p648 = pneg %p183
        $region62: #{tpu_custom_call.1} parent=39 // pred_check_branch
          %650 = sbr.rel (%p648) target = $region64
        $region63: #{tpu_custom_call.1} parent=39 // pred_region
          %s651 = smul.u32 2, %s29
          %653 = vsyncadd %s627, 0
          %s654 = smul.addr %s651, 3
          %s655 = smul.addr %s654, 4
          %s656 = scalar_lea.hbm %s6, %s655
          %s657 = sshll.u32 %s630, 4
          %s658 = int_to_ptr.vmem [resolvable:$true] %s657
          %s659 = sshll.u32 %s656, 4
          %s660 = int_to_ptr.hbm [resolvable:$true] %s659
          %665 = dma.vmem_to_hbm [thread:$0]  %s658, 384, %s660, %s627, 192, 192, 12
        $region64: #{tpu_custom_call.1} parent=39 // pred_fallthru
          _
      $region40: #{tpu_custom_call.1} parent=5 // pred_fallthru
        _
      %p666 = scmp.le.s32.totalorder 2, %s24
      // Predicated region
      $region65: #{tpu_custom_call.1} parent=5 // pred_check
        %p667 = pneg %p666
      $region66: #{tpu_custom_call.1} parent=5 // pred_check_branch
        %669 = sbr.rel (%p667) target = $region68
      $region67: #{tpu_custom_call.1} parent=5 // pred_region
        %s670 = ssub.s32 %s24, 2
        // Predicated region
        $region69: #{tpu_custom_call.1} parent=67 // pred_check
          %p671 = pneg %p163
        $region70: #{tpu_custom_call.1} parent=67 // pred_check_branch
          %673 = sbr.rel (%p671) target = $region72
        $region71: #{tpu_custom_call.1} parent=67 // pred_region
          %s674 = sand.u32 %s148, 1
          %s675 = scalar_lea.sflag [#allocation4], %s674
          %s676 = sand.u32 %s148, 1
          %s677 = smul.addr %s676, 8
          %s678 = scalar_lea.vmem [#allocation10], %s677
          %680 = dma.done %s675, 128
        $region72: #{tpu_custom_call.1} parent=67 // pred_fallthru
          _
        // Predicated region
        $region73: #{tpu_custom_call.1} parent=67 // pred_check
          %p681 = pneg %p189
        $region74: #{tpu_custom_call.1} parent=67 // pred_check_branch
          %683 = sbr.rel (%p681) target = $region76
        $region75: #{tpu_custom_call.1} parent=67 // pred_region
          %s684 = sand.u32 %s174, 1
          %s685 = scalar_lea.sflag [#allocation12], %s684
          %s686 = sand.u32 %s174, 1
          %s687 = smul.addr %s686, 24
          %s688 = scalar_lea.vmem [#allocation11], %s687
          %690 = dma.done %s685, 384
        $region76: #{tpu_custom_call.1} parent=67 // pred_fallthru
          _
      $region68: #{tpu_custom_call.1} parent=5 // pred_fallthru
        _
    $region6: #{tpu_custom_call.1} parent=1 // loop_footer
      %s28 = sadd.s32 1, %s24
    $region7: #{tpu_custom_call.1} parent=1 // loop_footer_branch
      %23 = sbr.rel target = $region3
    $region8: #{tpu_custom_call.1} parent=1 // loop_exit
      _
    %691 = vsyncpa [#allocation3], 1
    %s692 = scalar_lea.sflag [#allocation3], 1
    %693 = vsyncpa %s692, 1
    %694 = vsyncpa [#allocation6], 1
    %695 = vsyncpa [#allocation9], 1
    %696 = vsyncpa [#allocation4], 1
    %s697 = scalar_lea.sflag [#allocation4], 1
    %698 = vsyncpa %s697, 1
    %699 = vsyncpa [#allocation12], 1
    %s700 = scalar_lea.sflag [#allocation12], 1
    %701 = vsyncpa %s700, 1

</llo_original>
